<compile_context>
chip_gen: v6e
topology: v6e:2x2x1
jax: 0.10.0
libtpu: 0.0.40
codegen_flags: <defaults>
</compile_context>

<pallas_src>
import jax
import jax.numpy as jnp
import numpy as np
from jax.experimental import pallas as pl
from jax.experimental.pallas import tpu as pltpu

IMAGE_SIZE = 28                        # as in the PyTorch module
HIDDEN_SIZE = 32                       # small hidden for the synthetic run (module default 1000)
NUM_CLASSES = 10
IN_FEATURES = IMAGE_SIZE * IMAGE_SIZE  # 784
HIDDEN_PAD = 128                       # lane-dense hidden width
CLASSES_PAD = 128                      # lane-dense output width (sliced to 10 in the wrapper)


def _mlp_kernel(x_ref, w1_ref, w2_ref, w3_ref, w4_ref, b_ref, o_ref):
    # All four linear layers fused; bf16 operands, f32 accumulation on the MXU.
    # x arrives as f32 (single HBM read); cast to bf16 here, on-chip.
    x = x_ref[...].astype(jnp.bfloat16)
    b = b_ref[...]                                       # (8, 128) packed biases, rows 0..3 used
    h = jnp.dot(x, w1_ref[...], preferred_element_type=jnp.float32) + b[0:1, :]
    h = jnp.dot(h.astype(jnp.bfloat16), w2_ref[...],
                preferred_element_type=jnp.float32) + b[1:2, :]
    h = jnp.dot(h.astype(jnp.bfloat16), w3_ref[...],
                preferred_element_type=jnp.float32) + b[2:3, :]
    o = jnp.dot(h.astype(jnp.bfloat16), w4_ref[...],
                preferred_element_type=jnp.float32) + b[3:4, :]
    o_ref[...] = o.astype(o_ref.dtype)                   # (tile_b, 128): unmasked lane-dense store


def _round_up(v, m):
    return ((v + m - 1) // m) * m


def _pick_tile_b(B, max_tile=512):
    """MXU-aligned batch tile: multiple of 128, capped at max_tile, and sized so
    there are >= 2 grid tiles when possible (keeps v7x's second TensorCore busy)."""
    tile = _round_up(max(1, pl.cdiv(B, 2)), 128)
    return max(128, min(max_tile, tile))


def mlp_forward(x_nchw, padded_params, *, tile_b=None):
    """x_nchw: (B, 1, 28, 28) float32. Returns (B, NUM_CLASSES) float32."""
    w1, w2, w3, w4, b_packed = padded_params
    B = x_nchw.shape[0]
    # Same as torch.reshape(x, (-1, image_size*image_size)); stays f32 — the
    # bf16 cast is done inside the kernel on the DMA'd tile.
    x = jnp.reshape(x_nchw, (B, IN_FEATURES))

    if tile_b is None:
        tile_b = _pick_tile_b(B)
    num_tiles = pl.cdiv(B, tile_b)                       # ragged last block handled by Pallas

    full2 = lambda a: pl.BlockSpec(a.shape, lambda i: (0, 0))  # whole (2-D) array every step

    out = pl.pallas_call(
        _mlp_kernel,
        out_shape=jax.ShapeDtypeStruct((B, CLASSES_PAD), jnp.float32),
        grid_spec=pltpu.PrefetchScalarGridSpec(
            num_scalar_prefetch=0,
            grid=(num_tiles,),
            in_specs=[
                pl.BlockSpec((tile_b, IN_FEATURES), lambda i: (i, 0)),  # x tile (f32)
                full2(w1), full2(w2), full2(w3), full2(w4),
                full2(b_packed),
            ],
            out_specs=pl.BlockSpec((tile_b, CLASSES_PAD), lambda i: (i, 0)),
        ),
        compiler_params=pltpu.CompilerParams(
            dimension_semantics=("parallel",)),           # batch tiles split across TCs (v7x)
    )(x, w1, w2, w3, w4, b_packed)

    return out[:, :NUM_CLASSES]


def init_params(key):
    """Deterministic init mirroring nn.Linear's U(-1/sqrt(fan_in), 1/sqrt(fan_in)).
    Logical (unpadded) f32 params; weights stored transposed: (in_features, out_features)."""
    sizes = [
        (IN_FEATURES, HIDDEN_SIZE),
        (HIDDEN_SIZE, HIDDEN_SIZE),
        (HIDDEN_SIZE, HIDDEN_SIZE),
        (HIDDEN_SIZE, NUM_CLASSES),
    ]
    params = []
    for fan_in, fan_out in sizes:
        key, kw, kb = jax.random.split(key, 3)
        bound = 1.0 / np.sqrt(fan_in)
        w = jax.random.uniform(kw, (fan_in, fan_out), jnp.float32, -bound, bound)
        b = jax.random.uniform(kb, (1, fan_out), jnp.float32, -bound, bound)
        params += [w, b]
    return tuple(params)


def _pad_to(a, shape):
    return jnp.pad(a, [(0, s - d) for s, d in zip(shape, a.shape)])


def pad_params_for_kernel(params):
    """Zero-pad hidden/class dims to 128 lanes; cast weights to bf16, pack the four
    f32 biases into a single (8, 128) array (rows 0..3).  Zero padding keeps the
    real output columns numerically identical."""
    w1, b1, w2, b2, w3, b3, w4, b4 = params
    H, C = HIDDEN_PAD, CLASSES_PAD
    w1p = _pad_to(w1, (IN_FEATURES, H)).astype(jnp.bfloat16)
    w2p = _pad_to(w2, (H, H)).astype(jnp.bfloat16)
    w3p = _pad_to(w3, (H, H)).astype(jnp.bfloat16)
    w4p = _pad_to(w4, (H, C)).astype(jnp.bfloat16)
    b_packed = jnp.zeros((8, max(H, C)), jnp.float32)
    b_packed = (b_packed
                .at[0, :b1.shape[1]].set(b1[0])
                .at[1, :b2.shape[1]].set(b2[0])
                .at[2, :b3.shape[1]].set(b3[0])
                .at[3, :b4.shape[1]].set(b4[0]))
    return (w1p, w2p, w3p, w4p, b_packed)


def reference_forward_f32(x_nchw, params):
    """Pure f32 reference (the original module semantics)."""
    w1, b1, w2, b2, w3, b3, w4, b4 = params
    x = jnp.reshape(x_nchw, (x_nchw.shape[0], IN_FEATURES))
    h = x @ w1 + b1
    h = h @ w2 + b2
    h = h @ w3 + b3
    return h @ w4 + b4


def reference_forward_bf16(x_nchw, params):
    """Reference that emulates the kernel's numerics: bf16 operands, f32 accumulation."""
    w1, b1, w2, b2, w3, b3, w4, b4 = params
    bf = lambda a: a.astype(jnp.bfloat16)
    dot = lambda a, b: jnp.dot(bf(a), bf(b), preferred_element_type=jnp.float32)
    x = jnp.reshape(x_nchw, (x_nchw.shape[0], IN_FEATURES))
    h = dot(x, w1) + b1
    h = dot(h, w2) + b2
    h = dot(h, w3) + b3
    return dot(h, w4) + b4


if __name__ == "__main__":
    key = jax.random.PRNGKey(0)
    key, kx = jax.random.split(key)

    params = init_params(key)
    padded_params = pad_params_for_kernel(params)

    # batch=256: two parallel 128-row tiles (exercises the grid / megacore path).
    # batch=100: the module's batch_size; exercises the ragged last block
    #            (no wrapper-side padding any more) + class slicing.
    for batch in (256, 100):
        kx, kb = jax.random.split(kx)
        x = jax.random.normal(kb, (batch, 1, IMAGE_SIZE, IMAGE_SIZE), jnp.float32)

        out = jax.block_until_ready(mlp_forward(x, padded_params))
        assert out.shape == (batch, NUM_CLASSES)

        # Strict check vs. a reference with identical dtype behavior.
        ref_bf16 = reference_forward_bf16(x, params)
        np.testing.assert_allclose(np.asarray(out), np.asarray(ref_bf16),
                                   rtol=1e-4, atol=1e-4)
        # Sanity check vs. the pure-f32 module semantics (bf16 operand rounding only).
        ref_f32 = reference_forward_f32(x, params)
        np.testing.assert_allclose(np.asarray(out), np.asarray(ref_f32),
                                   rtol=5e-2, atol=5e-2)

    print("KERNEL_OK")
</pallas_src>

<mosaic_0001>
module attributes {stable_mosaic.version = 11 : i64} {
  func.func @_mlp_kernel(%arg0: i32, %arg1: memref<128x784xf32, #tpu.memory_space<vmem>>, %arg2: memref<784x128xbf16, #tpu.memory_space<vmem>>, %arg3: memref<128x128xbf16, #tpu.memory_space<vmem>>, %arg4: memref<128x128xbf16, #tpu.memory_space<vmem>>, %arg5: memref<128x128xbf16, #tpu.memory_space<vmem>>, %arg6: memref<8x128xf32, #tpu.memory_space<vmem>>, %arg7: memref<128x128xf32, #tpu.memory_space<vmem>>) attributes {dimension_semantics = [#tpu.dimension_semantics<parallel>], iteration_bounds = array<i64: 2>, scalar_prefetch = 0 : i64, scratch_operands = 0 : i64, tpu.core_type = #tpu.core_type<tc>, window_params = [{transform_indices = @transform_0, window_bounds = array<i64: 128, 784>}, {pipeline_mode = #tpu.pipeline_mode<synchronous>, transform_indices = @transform_1, window_bounds = array<i64: 784, 128>}, {pipeline_mode = #tpu.pipeline_mode<synchronous>, transform_indices = @transform_2, window_bounds = array<i64: 128, 128>}, {pipeline_mode = #tpu.pipeline_mode<synchronous>, transform_indices = @transform_3, window_bounds = array<i64: 128, 128>}, {pipeline_mode = #tpu.pipeline_mode<synchronous>, transform_indices = @transform_4, window_bounds = array<i64: 128, 128>}, {pipeline_mode = #tpu.pipeline_mode<synchronous>, transform_indices = @transform_5, window_bounds = array<i64: 8, 128>}, {transform_indices = @transform_6, window_bounds = array<i64: 128, 128>}]} {
    %c0 = arith.constant 0 : index
    %c0_0 = arith.constant 0 : index
    %0 = vector.load %arg1[%c0, %c0_0] : memref<128x784xf32, #tpu.memory_space<vmem>>, vector<128x784xf32>
    %1 = arith.truncf %0 : vector<128x784xf32> to vector<128x784xbf16>
    %c0_1 = arith.constant 0 : index
    %c0_2 = arith.constant 0 : index
    %2 = vector.load %arg6[%c0_1, %c0_2] : memref<8x128xf32, #tpu.memory_space<vmem>>, vector<8x128xf32>
    %c0_3 = arith.constant 0 : index
    %c0_4 = arith.constant 0 : index
    %3 = vector.load %arg2[%c0_3, %c0_4] : memref<784x128xbf16, #tpu.memory_space<vmem>>, vector<784x128xbf16>
    %cst = arith.constant dense<0.000000e+00> : vector<128x128xf32>
    %4 = tpu.matmul %1, %3, %cst {dimension_numbers = #tpu.dot_dimension_numbers<[1], [0], [0], [1], [0, 0, 1, 1], [], []>} : vector<128x784xbf16>, vector<784x128xbf16>, vector<128x128xf32> -> vector<128x128xf32>
    %5 = vector.extract_strided_slice %2 {offsets = [0, 0], sizes = [1, 128], strides = [1, 1]} : vector<8x128xf32> to vector<1x128xf32>
    %6 = vector.broadcast %5 : vector<1x128xf32> to vector<128x128xf32>
    %7 = arith.addf %4, %6 : vector<128x128xf32>
    %8 = arith.truncf %7 : vector<128x128xf32> to vector<128x128xbf16>
    %c0_5 = arith.constant 0 : index
    %c0_6 = arith.constant 0 : index
    %9 = vector.load %arg3[%c0_5, %c0_6] : memref<128x128xbf16, #tpu.memory_space<vmem>>, vector<128x128xbf16>
    %cst_7 = arith.constant dense<0.000000e+00> : vector<128x128xf32>
    %10 = tpu.matmul %8, %9, %cst_7 {dimension_numbers = #tpu.dot_dimension_numbers<[1], [0], [0], [1], [0, 0, 1, 1], [], []>} : vector<128x128xbf16>, vector<128x128xbf16>, vector<128x128xf32> -> vector<128x128xf32>
    %11 = vector.extract_strided_slice %2 {offsets = [1, 0], sizes = [1, 128], strides = [1, 1]} : vector<8x128xf32> to vector<1x128xf32>
    %12 = vector.broadcast %11 : vector<1x128xf32> to vector<128x128xf32>
    %13 = arith.addf %10, %12 : vector<128x128xf32>
    %14 = arith.truncf %13 : vector<128x128xf32> to vector<128x128xbf16>
    %c0_8 = arith.constant 0 : index
    %c0_9 = arith.constant 0 : index
    %15 = vector.load %arg4[%c0_8, %c0_9] : memref<128x128xbf16, #tpu.memory_space<vmem>>, vector<128x128xbf16>
    %cst_10 = arith.constant dense<0.000000e+00> : vector<128x128xf32>
    %16 = tpu.matmul %14, %15, %cst_10 {dimension_numbers = #tpu.dot_dimension_numbers<[1], [0], [0], [1], [0, 0, 1, 1], [], []>} : vector<128x128xbf16>, vector<128x128xbf16>, vector<128x128xf32> -> vector<128x128xf32>
    %17 = vector.extract_strided_slice %2 {offsets = [2, 0], sizes = [1, 128], strides = [1, 1]} : vector<8x128xf32> to vector<1x128xf32>
    %18 = vector.broadcast %17 : vector<1x128xf32> to vector<128x128xf32>
    %19 = arith.addf %16, %18 : vector<128x128xf32>
    %20 = arith.truncf %19 : vector<128x128xf32> to vector<128x128xbf16>
    %c0_11 = arith.constant 0 : index
    %c0_12 = arith.constant 0 : index
    %21 = vector.load %arg5[%c0_11, %c0_12] : memref<128x128xbf16, #tpu.memory_space<vmem>>, vector<128x128xbf16>
    %cst_13 = arith.constant dense<0.000000e+00> : vector<128x128xf32>
    %22 = tpu.matmul %20, %21, %cst_13 {dimension_numbers = #tpu.dot_dimension_numbers<[1], [0], [0], [1], [0, 0, 1, 1], [], []>} : vector<128x128xbf16>, vector<128x128xbf16>, vector<128x128xf32> -> vector<128x128xf32>
    %23 = vector.extract_strided_slice %2 {offsets = [3, 0], sizes = [1, 128], strides = [1, 1]} : vector<8x128xf32> to vector<1x128xf32>
    %24 = vector.broadcast %23 : vector<1x128xf32> to vector<128x128xf32>
    %25 = arith.addf %22, %24 : vector<128x128xf32>
    %c0_14 = arith.constant 0 : index
    %c0_15 = arith.constant 0 : index
    %26 = vector.load %arg7[%c0_14, %c0_15] : memref<128x128xf32, #tpu.memory_space<vmem>>, vector<128x128xf32>
    tpu.vector_store %arg7[%c0_14, %c0_15], %25 {strides = array<i32>} : memref<128x128xf32, #tpu.memory_space<vmem>>, vector<128x128xf32>,
    return
  }
  func.func @transform_0(%arg0: i32) -> (i32, i32) {
    %c0_i32 = arith.constant 0 : i32
    %c0_i32_0 = arith.constant 0 : i32
    return %arg0, %c0_i32 : i32, i32
  }
  func.func @transform_1(%arg0: i32) -> (i32, i32) {
    %c0_i32 = arith.constant 0 : i32
    %c0_i32_0 = arith.constant 0 : i32
    %c0_i32_1 = arith.constant 0 : i32
    return %c0_i32, %c0_i32_0 : i32, i32
  }
  func.func @transform_2(%arg0: i32) -> (i32, i32) {
    %c0_i32 = arith.constant 0 : i32
    %c0_i32_0 = arith.constant 0 : i32
    %c0_i32_1 = arith.constant 0 : i32
    return %c0_i32, %c0_i32_0 : i32, i32
  }
  func.func @transform_3(%arg0: i32) -> (i32, i32) {
    %c0_i32 = arith.constant 0 : i32
    %c0_i32_0 = arith.constant 0 : i32
    %c0_i32_1 = arith.constant 0 : i32
    return %c0_i32, %c0_i32_0 : i32, i32
  }
  func.func @transform_4(%arg0: i32) -> (i32, i32) {
    %c0_i32 = arith.constant 0 : i32
    %c0_i32_0 = arith.constant 0 : i32
    %c0_i32_1 = arith.constant 0 : i32
    return %c0_i32, %c0_i32_0 : i32, i32
  }
  func.func @transform_5(%arg0: i32) -> (i32, i32) {
    %c0_i32 = arith.constant 0 : i32
    %c0_i32_0 = arith.constant 0 : i32
    %c0_i32_1 = arith.constant 0 : i32
    return %c0_i32, %c0_i32_0 : i32, i32
  }
  func.func @transform_6(%arg0: i32) -> (i32, i32) {
    %c0_i32 = arith.constant 0 : i32
    %c0_i32_0 = arith.constant 0 : i32
    return %arg0, %c0_i32 : i32, i32
  }
}

</mosaic_0001>

<llo_original>
// kernel: tpu_custom_call.1
$region0: #{tpu_custom_call.1}
  #allocation0 [shape = 'u32[]', space=smem, size = 0x4, offset = 0x4, fixed_abs, tag = 'smem constant byte address 0x4 - core index']
  #allocation1 [shape = 'u32[144,128]{1,0:T(1,128)}', space=vmem, size = 0x12000, scoped, tag = 'internal scratch']
  %s0 = inlined_call_operand.vmem [shape: f32[256,784], index: 0, kind: input, shape index: {}]
  %s1 = inlined_call_operand.vmem [shape: bf16[784,128], index: 1, kind: input, shape index: {}]
  %s2 = inlined_call_operand.vmem [shape: bf16[128,128], index: 2, kind: input, shape index: {}]
  %s3 = inlined_call_operand.vmem [shape: bf16[128,128], index: 3, kind: input, shape index: {}]
  %s4 = inlined_call_operand.vmem [shape: bf16[128,128], index: 4, kind: input, shape index: {}]
  %s5 = inlined_call_operand.vmem [shape: f32[8,128], index: 5, kind: input, shape index: {}]
  %s6 = inlined_call_operand.hbm [shape: f32[256,128], index: 6, kind: output, shape index: {}]
  %s7 = sld [smem:[#allocation0]]
  $region57: #{tpu_custom_call.1} parent=0
    _
  %s9 = ssub.s32 1, %s7
  %s10 = scalar_select 0, %s9, %s7
  $region1: #{tpu_custom_call.1} parent=0
    #allocation2 [shape = 'u8[131072]{0}', space=vmem, size = 0x20000, scoped, tag = 'output window, operand 0']
    #allocation3 [shape = 's32[2]{0}', space=sflag, size = 0x8, scoped, tag = 'scoped memory for tpu_custom_call.1']
    %11 = vsyncpa [#allocation3], 0
    %s12 = scalar_lea.sflag [#allocation3], 1
    %13 = vsyncpa %s12, 0
    loop: start=0, step=1, limit=4
    $region2: #{tpu_custom_call.1} parent=1 // loop_pre_header
      _
    $region3: #{tpu_custom_call.1} parent=1 // loop_header
      %s15 = sphi 0, %s19
      %p16 = scmp.ge.s32.totalorder %s15, 4
      %s25 = sphi 0, %s27
      %s28 = sphi 0, %s25
      %s29 = sphi 0, %s28
      %s45 = sphi 0, %s29
      %s49 = sphi 0, %s49
      %s51 = sphi 0, %s49
      %s52 = sphi 0, %s51
      %s66 = sphi 0, %s52
      %s70 = sphi 0, %s70
      %s72 = sphi 0, %s70
      %s73 = sphi 0, %s72
      %s87 = sphi 0, %s73
      %s91 = sphi 0, %s91
      %s93 = sphi 0, %s91
      %s94 = sphi 0, %s93
      %s108 = sphi 0, %s94
      %s112 = sphi 0, %s112
      %s114 = sphi 0, %s112
      %s115 = sphi 0, %s114
      %s129 = sphi 0, %s115
      %s133 = sphi 0, %s133
      %s135 = sphi 0, %s133
      %s136 = sphi 0, %s135
      %s150 = sphi 0, %s136
      %s156 = sphi 0, %s158
      %s159 = sphi 0, %s156
      %s160 = sphi 0, %s159
      %s176 = sphi 0, %s160
    $region4: #{tpu_custom_call.1} parent=1 // loop_header_branch
      %18 = sbr.rel (%p16) target = $region8
    $region5: #{tpu_custom_call.1} parent=1 // loop_body
      %s20 = ssub.s32 %s15, 1
      %s21 = ssub.s32 %s15, 2
      %s22 = sadd.s32 %s15, 1
      %s23 = ssub.s32 %s15, %s22
      %p24 = scmp.eq.s32.totalorder %s23, 0
      %s26 = sadd.s32 %s25, 1
      %s27 = scalar_select %p24, %s25, %s26
      %p30 = pneg %p24
      %p31 = scmp.eq.s32.totalorder %s15, 1
      %p32 = por %p30, %p31
      %p33 = scmp.ne.s32.totalorder %s25, %s28
      %p34 = scmp.eq.s32.totalorder %s15, 0
      %p35 = por %p33, %p34
      %p36 = scmp.ne.s32.totalorder %s25, %s28
      %p37 = scmp.eq.s32.totalorder %s20, 1
      %p38 = por %p36, %p37
      %p39 = scmp.ne.s32.totalorder %s28, %s29
      %p40 = scmp.eq.s32.totalorder %s20, 0
      %p41 = por %p39, %p40
      %p42 = scmp.ne.s32.totalorder %s28, %s29
      %p43 = scmp.eq.s32.totalorder %s21, 1
      %p44 = por %p42, %p43
      %p46 = scmp.ne.s32.totalorder %s29, %s45
      %p47 = scmp.eq.s32.totalorder %s21, 0
      %p48 = por %p46, %p47
      %s50 = sadd.s32 %s49, 1
      %p53 = scmp.eq.s32.totalorder %s15, 1
      %p54 = scmp.ne.s32.totalorder %s49, %s51
      %p55 = scmp.eq.s32.totalorder %s15, 0
      %p56 = por %p54, %p55
      %p57 = scmp.ne.s32.totalorder %s49, %s51
      %p58 = scmp.eq.s32.totalorder %s20, 1
      %p59 = por %p57, %p58
      %p60 = scmp.ne.s32.totalorder %s51, %s52
      %p61 = scmp.eq.s32.totalorder %s20, 0
      %p62 = por %p60, %p61
      %p63 = scmp.ne.s32.totalorder %s51, %s52
      %p64 = scmp.eq.s32.totalorder %s21, 1
      %p65 = por %p63, %p64
      %p67 = scmp.ne.s32.totalorder %s52, %s66
      %p68 = scmp.eq.s32.totalorder %s21, 0
      %p69 = por %p67, %p68
      %s71 = sadd.s32 %s70, 1
      %p74 = scmp.eq.s32.totalorder %s15, 1
      %p75 = scmp.ne.s32.totalorder %s70, %s72
      %p76 = scmp.eq.s32.totalorder %s15, 0
      %p77 = por %p75, %p76
      %p78 = scmp.ne.s32.totalorder %s70, %s72
      %p79 = scmp.eq.s32.totalorder %s20, 1
      %p80 = por %p78, %p79
      %p81 = scmp.ne.s32.totalorder %s72, %s73
      %p82 = scmp.eq.s32.totalorder %s20, 0
      %p83 = por %p81, %p82
      %p84 = scmp.ne.s32.totalorder %s72, %s73
      %p85 = scmp.eq.s32.totalorder %s21, 1
      %p86 = por %p84, %p85
      %p88 = scmp.ne.s32.totalorder %s73, %s87
      %p89 = scmp.eq.s32.totalorder %s21, 0
      %p90 = por %p88, %p89
      %s92 = sadd.s32 %s91, 1
      %p95 = scmp.eq.s32.totalorder %s15, 1
      %p96 = scmp.ne.s32.totalorder %s91, %s93
      %p97 = scmp.eq.s32.totalorder %s15, 0
      %p98 = por %p96, %p97
      %p99 = scmp.ne.s32.totalorder %s91, %s93
      %p100 = scmp.eq.s32.totalorder %s20, 1
      %p101 = por %p99, %p100
      %p102 = scmp.ne.s32.totalorder %s93, %s94
      %p103 = scmp.eq.s32.totalorder %s20, 0
      %p104 = por %p102, %p103
      %p105 = scmp.ne.s32.totalorder %s93, %s94
      %p106 = scmp.eq.s32.totalorder %s21, 1
      %p107 = por %p105, %p106
      %p109 = scmp.ne.s32.totalorder %s94, %s108
      %p110 = scmp.eq.s32.totalorder %s21, 0
      %p111 = por %p109, %p110
      %s113 = sadd.s32 %s112, 1
      %p116 = scmp.eq.s32.totalorder %s15, 1
      %p117 = scmp.ne.s32.totalorder %s112, %s114
      %p118 = scmp.eq.s32.totalorder %s15, 0
      %p119 = por %p117, %p118
      %p120 = scmp.ne.s32.totalorder %s112, %s114
      %p121 = scmp.eq.s32.totalorder %s20, 1
      %p122 = por %p120, %p121
      %p123 = scmp.ne.s32.totalorder %s114, %s115
      %p124 = scmp.eq.s32.totalorder %s20, 0
      %p125 = por %p123, %p124
      %p126 = scmp.ne.s32.totalorder %s114, %s115
      %p127 = scmp.eq.s32.totalorder %s21, 1
      %p128 = por %p126, %p127
      %p130 = scmp.ne.s32.totalorder %s115, %s129
      %p131 = scmp.eq.s32.totalorder %s21, 0
      %p132 = por %p130, %p131
      %s134 = sadd.s32 %s133, 1
      %p137 = scmp.eq.s32.totalorder %s15, 1
      %p138 = scmp.ne.s32.totalorder %s133, %s135
      %p139 = scmp.eq.s32.totalorder %s15, 0
      %p140 = por %p138, %p139
      %p141 = scmp.ne.s32.totalorder %s133, %s135
      %p142 = scmp.eq.s32.totalorder %s20, 1
      %p143 = por %p141, %p142
      %p144 = scmp.ne.s32.totalorder %s135, %s136
      %p145 = scmp.eq.s32.totalorder %s20, 0
      %p146 = por %p144, %p145
      %p147 = scmp.ne.s32.totalorder %s135, %s136
      %p148 = scmp.eq.s32.totalorder %s21, 1
      %p149 = por %p147, %p148
      %p151 = scmp.ne.s32.totalorder %s136, %s150
      %p152 = scmp.eq.s32.totalorder %s21, 0
      %p153 = por %p151, %p152
      %s154 = ssub.s32 %s15, %s22
      %p155 = scmp.eq.s32.totalorder %s154, 0
      %s157 = sadd.s32 %s156, 1
      %s158 = scalar_select %p155, %s156, %s157
      %p161 = pneg %p155
      %p162 = scmp.eq.s32.totalorder %s15, 1
      %p163 = por %p161, %p162
      %p164 = scmp.ne.s32.totalorder %s156, %s159
      %p165 = scmp.eq.s32.totalorder %s15, 0
      %p166 = por %p164, %p165
      %p167 = scmp.ne.s32.totalorder %s156, %s159
      %p168 = scmp.eq.s32.totalorder %s20, 1
      %p169 = por %p167, %p168
      %p170 = scmp.ne.s32.totalorder %s159, %s160
      %p171 = scmp.eq.s32.totalorder %s20, 0
      %p172 = por %p170, %p171
      %p173 = scmp.ne.s32.totalorder %s159, %s160
      %p174 = scmp.eq.s32.totalorder %s21, 1
      %p175 = por %p173, %p174
      %p177 = scmp.ne.s32.totalorder %s160, %s176
      %p178 = scmp.eq.s32.totalorder %s21, 0
      %p179 = por %p177, %p178
      %p180 = scmp.le.s32.totalorder 1, %s15
      %p181 = scmp.lt.s32.totalorder %s15, 3
      %p182 = pnand %p180, %p181
      %p183 = pneg %p182
      // Predicated region
      $region9: #{tpu_custom_call.1} parent=5 // pred_check
        _
      $region10: #{tpu_custom_call.1} parent=5 // pred_check_branch
        %185 = sbr.rel (%p182) target = $region12
      $region11: #{tpu_custom_call.1} parent=5 // pred_region
        %s186 = ssub.s32 %s15, 1
        // Predicated region
        $region13: #{tpu_custom_call.1} parent=11 // pred_check
          %p187 = pneg %p62
        $region14: #{tpu_custom_call.1} parent=11 // pred_check_branch
          %189 = sbr.rel (%p187) target = $region16
        $region15: #{tpu_custom_call.1} parent=11 // pred_region
          _
        $region16: #{tpu_custom_call.1} parent=11 // pred_fallthru
          _
        // Predicated region
        $region17: #{tpu_custom_call.1} parent=11 // pred_check
          %p190 = pneg %p83
        $region18: #{tpu_custom_call.1} parent=11 // pred_check_branch
          %192 = sbr.rel (%p190) target = $region20
        $region19: #{tpu_custom_call.1} parent=11 // pred_region
          _
        $region20: #{tpu_custom_call.1} parent=11 // pred_fallthru
          _
        // Predicated region
        $region21: #{tpu_custom_call.1} parent=11 // pred_check
          %p193 = pneg %p104
        $region22: #{tpu_custom_call.1} parent=11 // pred_check_branch
          %195 = sbr.rel (%p193) target = $region24
        $region23: #{tpu_custom_call.1} parent=11 // pred_region
          _
        $region24: #{tpu_custom_call.1} parent=11 // pred_fallthru
          _
        // Predicated region
        $region25: #{tpu_custom_call.1} parent=11 // pred_check
          %p196 = pneg %p125
        $region26: #{tpu_custom_call.1} parent=11 // pred_check_branch
          %198 = sbr.rel (%p196) target = $region28
        $region27: #{tpu_custom_call.1} parent=11 // pred_region
          _
        $region28: #{tpu_custom_call.1} parent=11 // pred_fallthru
          _
        // Predicated region
        $region29: #{tpu_custom_call.1} parent=11 // pred_check
          %p199 = pneg %p146
        $region30: #{tpu_custom_call.1} parent=11 // pred_check_branch
          %201 = sbr.rel (%p199) target = $region32
        $region31: #{tpu_custom_call.1} parent=11 // pred_region
          _
        $region32: #{tpu_custom_call.1} parent=11 // pred_fallthru
          _
      $region12: #{tpu_custom_call.1} parent=5 // pred_fallthru
        _
      %p202 = scmp.lt.s32.totalorder %s15, 2
      // Predicated region
      $region33: #{tpu_custom_call.1} parent=5 // pred_check
        %p203 = pneg %p202
      $region34: #{tpu_custom_call.1} parent=5 // pred_check_branch
        %205 = sbr.rel (%p203) target = $region36
      $region35: #{tpu_custom_call.1} parent=5 // pred_region
        // Predicated region
        $region37: #{tpu_custom_call.1} parent=35 // pred_check
          %p206 = pneg %p35
        $region38: #{tpu_custom_call.1} parent=35 // pred_check_branch
          %208 = sbr.rel (%p206) target = $region40
        $region39: #{tpu_custom_call.1} parent=35 // pred_region
          %s209 = smul.u32 16, %s15
          %p210 = scmp.lt.s32.totalorder %s209, 31
          %s211 = scalar_select %p210, %s209, 31
          %s212 = smul.addr %s211, 7
          %s213 = smul.addr %s212, 8
          %s214 = scalar_lea.vmem %s0, %s213
          %s215 = smul.u32 16, %s15
        $region40: #{tpu_custom_call.1} parent=35 // pred_fallthru
          _
      $region36: #{tpu_custom_call.1} parent=5 // pred_fallthru
        _
      %p216 = scmp.le.s32.totalorder 1, %s15
      %p217 = scmp.lt.s32.totalorder %s15, 3
      %p218 = pnand %p216, %p217
      %p219 = pneg %p218
      // Predicated region
      $region41: #{tpu_custom_call.1} parent=5 // pred_check
        _
      $region42: #{tpu_custom_call.1} parent=5 // pred_check_branch
        %221 = sbr.rel (%p218) target = $region44
      $region43: #{tpu_custom_call.1} parent=5 // pred_region
        %s222 = ssub.s32 %s15, 1
        %s223 = smul.u32 16, %s20
        %p224 = scmp.lt.s32.totalorder %s223, 31
        %s225 = scalar_select %p224, %s223, 31
        %s226 = smul.addr %s225, 7
        %s227 = smul.addr %s226, 8
        %s228 = scalar_lea.vmem %s0, %s227
        %p229 = pneg %p41
        %p230 = pneg %p38
        %p231 = pneg %p62
        %p232 = pneg %p59
        %p233 = pneg %p83
        %p234 = pneg %p80
        %p235 = pneg %p104
        %p236 = pneg %p101
        %p237 = pneg %p125
        %p238 = pneg %p122
        %p239 = pneg %p146
        %p240 = pneg %p143
        %p241 = pneg %p172
        %p242 = pneg %p169
        %s243 = sand.u32 %s159, 1
        %s244 = scalar_lea.sflag [#allocation3], %s243
        %s245 = sand.u32 %s159, 1
        %s246 = smul.addr %s245, 128
        %s247 = scalar_lea.vmem [#allocation2], %s246
        %s248 = smul.u32 16, %s20
        %p249 = scmp.lt.s32.totalorder %s248, 31
        %s250 = scalar_select %p249, %s248, 31
        %s251 = smul.addr %s250, 7
        %s252 = smul.addr %s251, 8
        %s253 = scalar_lea.vmem %s0, %s252
        %s254 = smul.u32 16, %s20
        %s255 = smul.u32 16, %s20
        %v257 = vld [vmem:[%s253] sm:$0xff]
        %v258 = vld [vmem:[%s253 + $0x8] sm:$0xff]
        %v259 = vld [vmem:[%s253 + $0x10] sm:$0xff]
        %v260 = vld [vmem:[%s253 + $0x18] sm:$0xff]
        %v261 = vld [vmem:[%s253 + $0x20] sm:$0xff]
        %v262 = vld [vmem:[%s253 + $0x28] sm:$0xff]
        %v263 = vld [vmem:[%s253 + $0x30] sm:$0xff]
        %v264 = vld [vmem:[%s253 + $0x38] sm:$0xff]
        %v265 = vld [vmem:[%s253 + $0x40] sm:$0xff]
        %v266 = vld [vmem:[%s253 + $0x48] sm:$0xff]
        %v267 = vld [vmem:[%s253 + $0x50] sm:$0xff]
        %v268 = vld [vmem:[%s253 + $0x58] sm:$0xff]
        %v269 = vld [vmem:[%s253 + $0x60] sm:$0xff]
        %v270 = vld [vmem:[%s253 + $0x68] sm:$0xff]
        %v271 = vld [vmem:[%s253 + $0x70] sm:$0xff]
        %v272 = vld [vmem:[%s253 + $0x78] sm:$0xff]
        %v273 = vld [vmem:[%s253 + $0x80] sm:$0xff]
        %v274 = vld [vmem:[%s253 + $0x88] sm:$0xff]
        %v275 = vld [vmem:[%s253 + $0x90] sm:$0xff]
        %v276 = vld [vmem:[%s253 + $0x98] sm:$0xff]
        %v277 = vld [vmem:[%s253 + $0xa0] sm:$0xff]
        %v278 = vld [vmem:[%s253 + $0xa8] sm:$0xff]
        %v279 = vld [vmem:[%s253 + $0xb0] sm:$0xff]
        %v280 = vld [vmem:[%s253 + $0xb8] sm:$0xff]
        %v281 = vld [vmem:[%s253 + $0xc0] sm:$0xff]
        %v282 = vld [vmem:[%s253 + $0xc8] sm:$0xff]
        %v283 = vld [vmem:[%s253 + $0xd0] sm:$0xff]
        %v284 = vld [vmem:[%s253 + $0xd8] sm:$0xff]
        %v285 = vld [vmem:[%s253 + $0xe0] sm:$0xff]
        %v286 = vld [vmem:[%s253 + $0xe8] sm:$0xff]
        %v287 = vld [vmem:[%s253 + $0xf0] sm:$0xff]
        %v288 = vld [vmem:[%s253 + $0xf8] sm:$0xff]
        %v289 = vld [vmem:[%s253 + $0x100] sm:$0xff]
        %v290 = vld [vmem:[%s253 + $0x108] sm:$0xff]
        %v291 = vld [vmem:[%s253 + $0x110] sm:$0xff]
        %v292 = vld [vmem:[%s253 + $0x118] sm:$0xff]
        %v293 = vld [vmem:[%s253 + $0x120] sm:$0xff]
        %v294 = vld [vmem:[%s253 + $0x128] sm:$0xff]
        %v295 = vld [vmem:[%s253 + $0x130] sm:$0xff]
        %v296 = vld [vmem:[%s253 + $0x138] sm:$0xff]
        %v297 = vld [vmem:[%s253 + $0x140] sm:$0xff]
        %v298 = vld [vmem:[%s253 + $0x148] sm:$0xff]
        %v299 = vld [vmem:[%s253 + $0x150] sm:$0xff]
        %v300 = vld [vmem:[%s253 + $0x158] sm:$0xff]
        %v301 = vld [vmem:[%s253 + $0x160] sm:$0xff]
        %v302 = vld [vmem:[%s253 + $0x168] sm:$0xff]
        %v303 = vld [vmem:[%s253 + $0x170] sm:$0xff]
        %v304 = vld [vmem:[%s253 + $0x178] sm:$0xff]
        %v305 = vld [vmem:[%s253 + $0x180] sm:$0xff]
        %v306 = vld [vmem:[%s253 + $0x188] sm:$0xff]
        %v307 = vld [vmem:[%s253 + $0x190] sm:$0xff]
        %v308 = vld [vmem:[%s253 + $0x198] sm:$0xff]
        %v309 = vld [vmem:[%s253 + $0x1a0] sm:$0xff]
        %v310 = vld [vmem:[%s253 + $0x1a8] sm:$0xff]
        %v311 = vld [vmem:[%s253 + $0x1b0] sm:$0xff]
        %v312 = vld [vmem:[%s253 + $0x1b8] sm:$0xff]
        %v313 = vld [vmem:[%s253 + $0x1c0] sm:$0xff]
        %v314 = vld [vmem:[%s253 + $0x1c8] sm:$0xff]
        %v315 = vld [vmem:[%s253 + $0x1d0] sm:$0xff]
        %v316 = vld [vmem:[%s253 + $0x1d8] sm:$0xff]
        %v317 = vld [vmem:[%s253 + $0x1e0] sm:$0xff]
        %v318 = vld [vmem:[%s253 + $0x1e8] sm:$0xff]
        %v319 = vld [vmem:[%s253 + $0x1f0] sm:$0xff]
        %v320 = vld [vmem:[%s253 + $0x1f8] sm:$0xff]
        %v321 = vld [vmem:[%s253 + $0x200] sm:$0xff]
        %v322 = vld [vmem:[%s253 + $0x208] sm:$0xff]
        %v323 = vld [vmem:[%s253 + $0x210] sm:$0xff]
        %v324 = vld [vmem:[%s253 + $0x218] sm:$0xff]
        %v325 = vld [vmem:[%s253 + $0x220] sm:$0xff]
        %v326 = vld [vmem:[%s253 + $0x228] sm:$0xff]
        %v327 = vld [vmem:[%s253 + $0x230] sm:$0xff]
        %v328 = vld [vmem:[%s253 + $0x238] sm:$0xff]
        %v329 = vld [vmem:[%s253 + $0x240] sm:$0xff]
        %v330 = vld [vmem:[%s253 + $0x248] sm:$0xff]
        %v331 = vld [vmem:[%s253 + $0x250] sm:$0xff]
        %v332 = vld [vmem:[%s253 + $0x258] sm:$0xff]
        %v333 = vld [vmem:[%s253 + $0x260] sm:$0xff]
        %v334 = vld [vmem:[%s253 + $0x268] sm:$0xff]
        %v335 = vld [vmem:[%s253 + $0x270] sm:$0xff]
        %v336 = vld [vmem:[%s253 + $0x278] sm:$0xff]
        %v337 = vld [vmem:[%s253 + $0x280] sm:$0xff]
        %v338 = vld [vmem:[%s253 + $0x288] sm:$0xff]
        %v339 = vld [vmem:[%s253 + $0x290] sm:$0xff]
        %v340 = vld [vmem:[%s253 + $0x298] sm:$0xff]
        %v341 = vld [vmem:[%s253 + $0x2a0] sm:$0xff]
        %v342 = vld [vmem:[%s253 + $0x2a8] sm:$0xff]
        %v343 = vld [vmem:[%s253 + $0x2b0] sm:$0xff]
        %v344 = vld [vmem:[%s253 + $0x2b8] sm:$0xff]
        %v345 = vld [vmem:[%s253 + $0x2c0] sm:$0xff]
        %v346 = vld [vmem:[%s253 + $0x2c8] sm:$0xff]
        %v347 = vld [vmem:[%s253 + $0x2d0] sm:$0xff]
        %v348 = vld [vmem:[%s253 + $0x2d8] sm:$0xff]
        %v349 = vld [vmem:[%s253 + $0x2e0] sm:$0xff]
        %v350 = vld [vmem:[%s253 + $0x2e8] sm:$0xff]
        %v351 = vld [vmem:[%s253 + $0x2f0] sm:$0xff]
        %v352 = vld [vmem:[%s253 + $0x2f8] sm:$0xff]
        %v353 = vld [vmem:[%s253 + $0x300] sm:$0xff]
        %v354 = vld [vmem:[%s253 + $0x308] sm:$0xff]
        %v355 = vld [vmem:[%s253 + $0x310] sm:$0xff]
        %v356 = vld [vmem:[%s253 + $0x318] sm:$0xff]
        %v357 = vld [vmem:[%s253 + $0x320] sm:$0xff]
        %v358 = vld [vmem:[%s253 + $0x328] sm:$0xff]
        %v359 = vld [vmem:[%s253 + $0x330] sm:$0xff]
        %v360 = vld [vmem:[%s253 + $0x338] sm:$0xff]
        %v361 = vld [vmem:[%s253 + $0x340] sm:$0xff]
        %v362 = vld [vmem:[%s253 + $0x348] sm:$0xff]
        %v363 = vld [vmem:[%s253 + $0x350] sm:$0xff]
        %v364 = vld [vmem:[%s253 + $0x358] sm:$0xff]
        %v365 = vld [vmem:[%s253 + $0x360] sm:$0xff]
        %v366 = vld [vmem:[%s253 + $0x368] sm:$0xff]
        %v367 = vld [vmem:[%s253 + $0x370] sm:$0xff]
        %v368 = vld [vmem:[%s253 + $0x378] sm:$0xff]
        %v369 = vpack.c.bf16 %v264, %v257
        %v370 = vpack.c.bf16 %v265, %v258
        %v371 = vpack.c.bf16 %v266, %v259
        %v372 = vpack.c.bf16 %v267, %v260
        %v373 = vpack.c.bf16 %v268, %v261
        %v374 = vpack.c.bf16 %v269, %v262
        %v375 = vpack.c.bf16 %v270, %v263
        %v376 = vpack.c.bf16 %v278, %v271
        %v377 = vpack.c.bf16 %v279, %v272
        %v378 = vpack.c.bf16 %v280, %v273
        %v379 = vpack.c.bf16 %v281, %v274
        %v380 = vpack.c.bf16 %v282, %v275
        %v381 = vpack.c.bf16 %v283, %v276
        %v382 = vpack.c.bf16 %v284, %v277
        %v383 = vpack.c.bf16 %v292, %v285
        %v384 = vpack.c.bf16 %v293, %v286
        %v385 = vpack.c.bf16 %v294, %v287
        %v386 = vpack.c.bf16 %v295, %v288
        %v387 = vpack.c.bf16 %v296, %v289
        %v388 = vpack.c.bf16 %v297, %v290
        %v389 = vpack.c.bf16 %v298, %v291
        %v390 = vpack.c.bf16 %v306, %v299
        %v391 = vpack.c.bf16 %v307, %v300
        %v392 = vpack.c.bf16 %v308, %v301
        %v393 = vpack.c.bf16 %v309, %v302
        %v394 = vpack.c.bf16 %v310, %v303
        %v395 = vpack.c.bf16 %v311, %v304
        %v396 = vpack.c.bf16 %v312, %v305
        %v397 = vpack.c.bf16 %v320, %v313
        %v398 = vpack.c.bf16 %v321, %v314
        %v399 = vpack.c.bf16 %v322, %v315
        %v400 = vpack.c.bf16 %v323, %v316
        %v401 = vpack.c.bf16 %v324, %v317
        %v402 = vpack.c.bf16 %v325, %v318
        %v403 = vpack.c.bf16 %v326, %v319
        %v404 = vpack.c.bf16 %v334, %v327
        %v405 = vpack.c.bf16 %v335, %v328
        %v406 = vpack.c.bf16 %v336, %v329
        %v407 = vpack.c.bf16 %v337, %v330
        %v408 = vpack.c.bf16 %v338, %v331
        %v409 = vpack.c.bf16 %v339, %v332
        %v410 = vpack.c.bf16 %v340, %v333
        %v411 = vpack.c.bf16 %v348, %v341
        %v412 = vpack.c.bf16 %v349, %v342
        %v413 = vpack.c.bf16 %v350, %v343
        %v414 = vpack.c.bf16 %v351, %v344
        %v415 = vpack.c.bf16 %v352, %v345
        %v416 = vpack.c.bf16 %v353, %v346
        %v417 = vpack.c.bf16 %v354, %v347
        %v418 = vpack.c.bf16 %v362, %v355
        %v419 = vpack.c.bf16 %v363, %v356
        %v420 = vpack.c.bf16 %v364, %v357
        %v421 = vpack.c.bf16 %v365, %v358
        %v422 = vpack.c.bf16 %v366, %v359
        %v423 = vpack.c.bf16 %v367, %v360
        %v424 = vpack.c.bf16 %v368, %v361
        %v425 = vld [vmem:[%s5] sm:$0xff]
        %v426 = vld [vmem:[%s1] sm:$0xf]
        %v427 = vld [vmem:[%s1 + $0x4] sm:$0xf]
        %v428 = vld [vmem:[%s1 + $0x8] sm:$0xf]
        %v429 = vld [vmem:[%s1 + $0xc] sm:$0xf]
        %v430 = vld [vmem:[%s1 + $0x10] sm:$0xf]
        %v431 = vld [vmem:[%s1 + $0x14] sm:$0xf]
        %v432 = vld [vmem:[%s1 + $0x18] sm:$0xf]
        %v433 = vld [vmem:[%s1 + $0x1c] sm:$0xf]
        %v434 = vld [vmem:[%s1 + $0x20] sm:$0xf]
        %v435 = vld [vmem:[%s1 + $0x24] sm:$0xf]
        %v436 = vld [vmem:[%s1 + $0x28] sm:$0xf]
        %v437 = vld [vmem:[%s1 + $0x2c] sm:$0xf]
        %v438 = vld [vmem:[%s1 + $0x30] sm:$0xf]
        %v439 = vld [vmem:[%s1 + $0x34] sm:$0xf]
        %v440 = vld [vmem:[%s1 + $0x38] sm:$0xf]
        %v441 = vld [vmem:[%s1 + $0x3c] sm:$0xf]
        %v442 = vld [vmem:[%s1 + $0x40] sm:$0xf]
        %v443 = vld [vmem:[%s1 + $0x44] sm:$0xf]
        %v444 = vld [vmem:[%s1 + $0x48] sm:$0xf]
        %v445 = vld [vmem:[%s1 + $0x4c] sm:$0xf]
        %v446 = vld [vmem:[%s1 + $0x50] sm:$0xf]
        %v447 = vld [vmem:[%s1 + $0x54] sm:$0xf]
        %v448 = vld [vmem:[%s1 + $0x58] sm:$0xf]
        %v449 = vld [vmem:[%s1 + $0x5c] sm:$0xf]
        %v450 = vld [vmem:[%s1 + $0x60] sm:$0xf]
        %v451 = vld [vmem:[%s1 + $0x64] sm:$0xf]
        %v452 = vld [vmem:[%s1 + $0x68] sm:$0xf]
        %v453 = vld [vmem:[%s1 + $0x6c] sm:$0xf]
        %v454 = vld [vmem:[%s1 + $0x70] sm:$0xf]
        %v455 = vld [vmem:[%s1 + $0x74] sm:$0xf]
        %v456 = vld [vmem:[%s1 + $0x78] sm:$0xf]
        %v457 = vld [vmem:[%s1 + $0x7c] sm:$0xf]
        %v458 = vld [vmem:[%s1 + $0x80] sm:$0xf]
        %v459 = vld [vmem:[%s1 + $0x84] sm:$0xf]
        %v460 = vld [vmem:[%s1 + $0x88] sm:$0xf]
        %v461 = vld [vmem:[%s1 + $0x8c] sm:$0xf]
        %v462 = vld [vmem:[%s1 + $0x90] sm:$0xf]
        %v463 = vld [vmem:[%s1 + $0x94] sm:$0xf]
        %v464 = vld [vmem:[%s1 + $0x98] sm:$0xf]
        %v465 = vld [vmem:[%s1 + $0x9c] sm:$0xf]
        %v466 = vld [vmem:[%s1 + $0xa0] sm:$0xf]
        %v467 = vld [vmem:[%s1 + $0xa4] sm:$0xf]
        %v468 = vld [vmem:[%s1 + $0xa8] sm:$0xf]
        %v469 = vld [vmem:[%s1 + $0xac] sm:$0xf]
        %v470 = vld [vmem:[%s1 + $0xb0] sm:$0xf]
        %v471 = vld [vmem:[%s1 + $0xb4] sm:$0xf]
        %v472 = vld [vmem:[%s1 + $0xb8] sm:$0xf]
        %v473 = vld [vmem:[%s1 + $0xbc] sm:$0xf]
        %v474 = vld [vmem:[%s1 + $0xc0] sm:$0xf]
        %v475 = vld [vmem:[%s1 + $0xc4] sm:$0xf]
        %v476 = vld [vmem:[%s1 + $0xc8] sm:$0xf]
        %v477 = vld [vmem:[%s1 + $0xcc] sm:$0xf]
        %v478 = vld [vmem:[%s1 + $0xd0] sm:$0xf]
        %v479 = vld [vmem:[%s1 + $0xd4] sm:$0xf]
        %v480 = vld [vmem:[%s1 + $0xd8] sm:$0xf]
        %v481 = vld [vmem:[%s1 + $0xdc] sm:$0xf]
        %v482 = vld [vmem:[%s1 + $0xe0] sm:$0xf]
        %v483 = vld [vmem:[%s1 + $0xe4] sm:$0xf]
        %v484 = vld [vmem:[%s1 + $0xe8] sm:$0xf]
        %v485 = vld [vmem:[%s1 + $0xec] sm:$0xf]
        %v486 = vld [vmem:[%s1 + $0xf0] sm:$0xf]
        %v487 = vld [vmem:[%s1 + $0xf4] sm:$0xf]
        %v488 = vld [vmem:[%s1 + $0xf8] sm:$0xf]
        %v489 = vld [vmem:[%s1 + $0xfc] sm:$0xf]
        %v490 = vld [vmem:[%s1 + $0x100] sm:$0xf]
        %v491 = vld [vmem:[%s1 + $0x104] sm:$0xf]
        %v492 = vld [vmem:[%s1 + $0x108] sm:$0xf]
        %v493 = vld [vmem:[%s1 + $0x10c] sm:$0xf]
        %v494 = vld [vmem:[%s1 + $0x110] sm:$0xf]
        %v495 = vld [vmem:[%s1 + $0x114] sm:$0xf]
        %v496 = vld [vmem:[%s1 + $0x118] sm:$0xf]
        %v497 = vld [vmem:[%s1 + $0x11c] sm:$0xf]
        %v498 = vld [vmem:[%s1 + $0x120] sm:$0xf]
        %v499 = vld [vmem:[%s1 + $0x124] sm:$0xf]
        %v500 = vld [vmem:[%s1 + $0x128] sm:$0xf]
        %v501 = vld [vmem:[%s1 + $0x12c] sm:$0xf]
        %v502 = vld [vmem:[%s1 + $0x130] sm:$0xf]
        %v503 = vld [vmem:[%s1 + $0x134] sm:$0xf]
        %v504 = vld [vmem:[%s1 + $0x138] sm:$0xf]
        %v505 = vld [vmem:[%s1 + $0x13c] sm:$0xf]
        %v506 = vld [vmem:[%s1 + $0x140] sm:$0xf]
        %v507 = vld [vmem:[%s1 + $0x144] sm:$0xf]
        %v508 = vld [vmem:[%s1 + $0x148] sm:$0xf]
        %v509 = vld [vmem:[%s1 + $0x14c] sm:$0xf]
        %v510 = vld [vmem:[%s1 + $0x150] sm:$0xf]
        %v511 = vld [vmem:[%s1 + $0x154] sm:$0xf]
        %v512 = vld [vmem:[%s1 + $0x158] sm:$0xf]
        %v513 = vld [vmem:[%s1 + $0x15c] sm:$0xf]
        %v514 = vld [vmem:[%s1 + $0x160] sm:$0xf]
        %v515 = vld [vmem:[%s1 + $0x164] sm:$0xf]
        %v516 = vld [vmem:[%s1 + $0x168] sm:$0xf]
        %v517 = vld [vmem:[%s1 + $0x16c] sm:$0xf]
        %v518 = vld [vmem:[%s1 + $0x170] sm:$0xf]
        %v519 = vld [vmem:[%s1 + $0x174] sm:$0xf]
        %v520 = vld [vmem:[%s1 + $0x178] sm:$0xf]
        %v521 = vld [vmem:[%s1 + $0x17c] sm:$0xf]
        %v522 = vld [vmem:[%s1 + $0x180] sm:$0xf]
        %v523 = vld [vmem:[%s1 + $0x184] sm:$0xf]
        %v524 = vlaneseq
        %v525 = vshrl.u32 %v524, 7
        %v526 = vsub.s32 0, %v525
        %v527 = vrot.slane %v425, %v526
        %v626 = vunpack.c.l.b16 %v426
        %v627 = vunpack.c.l.b16 %v427
        %v628 = vunpack.c.l.b16 %v428
        %v629 = vunpack.c.l.b16 %v429
        %v630 = vunpack.c.l.b16 %v430
        %v631 = vunpack.c.l.b16 %v431
        %v632 = vunpack.c.l.b16 %v432
        %v633 = vunpack.c.l.b16 %v433
        %v634 = vunpack.c.l.b16 %v434
        %v635 = vunpack.c.l.b16 %v435
        %v636 = vunpack.c.l.b16 %v436
        %v637 = vunpack.c.l.b16 %v437
        %v638 = vunpack.c.l.b16 %v438
        %v639 = vunpack.c.l.b16 %v439
        %v640 = vunpack.c.l.b16 %v440
        %v641 = vunpack.c.l.b16 %v441
        %v642 = vunpack.c.l.b16 %v442
        %v643 = vunpack.c.l.b16 %v443
        %v644 = vunpack.c.l.b16 %v444
        %v645 = vunpack.c.l.b16 %v445
        %v646 = vunpack.c.l.b16 %v446
        %v647 = vunpack.c.l.b16 %v447
        %v648 = vunpack.c.l.b16 %v448
        %v649 = vunpack.c.l.b16 %v449
        %v650 = vunpack.c.l.b16 %v450
        %v651 = vunpack.c.l.b16 %v451
        %v652 = vunpack.c.l.b16 %v452
        %v653 = vunpack.c.l.b16 %v453
        %v654 = vunpack.c.l.b16 %v454
        %v655 = vunpack.c.l.b16 %v455
        %v656 = vunpack.c.l.b16 %v456
        %v657 = vunpack.c.l.b16 %v457
        %v658 = vunpack.c.l.b16 %v458
        %v659 = vunpack.c.l.b16 %v459
        %v660 = vunpack.c.l.b16 %v460
        %v661 = vunpack.c.l.b16 %v461
        %v662 = vunpack.c.l.b16 %v462
        %v663 = vunpack.c.l.b16 %v463
        %v664 = vunpack.c.l.b16 %v464
        %v665 = vunpack.c.l.b16 %v465
        %v666 = vunpack.c.l.b16 %v466
        %v667 = vunpack.c.l.b16 %v467
        %v668 = vunpack.c.l.b16 %v468
        %v669 = vunpack.c.l.b16 %v469
        %v670 = vunpack.c.l.b16 %v470
        %v671 = vunpack.c.l.b16 %v471
        %v672 = vunpack.c.l.b16 %v472
        %v673 = vunpack.c.l.b16 %v473
        %v674 = vunpack.c.l.b16 %v474
        %v675 = vunpack.c.l.b16 %v475
        %v676 = vunpack.c.l.b16 %v476
        %v677 = vunpack.c.l.b16 %v477
        %v678 = vunpack.c.l.b16 %v478
        %v679 = vunpack.c.l.b16 %v479
        %v680 = vunpack.c.l.b16 %v480
        %v681 = vunpack.c.l.b16 %v481
        %v682 = vunpack.c.l.b16 %v482
        %v683 = vunpack.c.l.b16 %v483
        %v684 = vunpack.c.l.b16 %v484
        %v685 = vunpack.c.l.b16 %v485
        %v686 = vunpack.c.l.b16 %v486
        %v687 = vunpack.c.l.b16 %v487
        %v688 = vunpack.c.l.b16 %v488
        %v689 = vunpack.c.l.b16 %v489
        %v690 = vunpack.c.l.b16 %v490
        %v691 = vunpack.c.l.b16 %v491
        %v692 = vunpack.c.l.b16 %v492
        %v693 = vunpack.c.l.b16 %v493
        %v694 = vunpack.c.l.b16 %v494
        %v695 = vunpack.c.l.b16 %v495
        %v696 = vunpack.c.l.b16 %v496
        %v697 = vunpack.c.l.b16 %v497
        %v698 = vunpack.c.l.b16 %v498
        %v699 = vunpack.c.l.b16 %v499
        %v700 = vunpack.c.l.b16 %v500
        %v701 = vunpack.c.l.b16 %v501
        %v702 = vunpack.c.l.b16 %v502
        %v703 = vunpack.c.l.b16 %v503
        %v704 = vunpack.c.l.b16 %v504
        %v705 = vunpack.c.l.b16 %v505
        %v706 = vunpack.c.l.b16 %v506
        %v707 = vunpack.c.l.b16 %v507
        %v708 = vunpack.c.l.b16 %v508
        %v709 = vunpack.c.l.b16 %v509
        %v710 = vunpack.c.l.b16 %v510
        %v711 = vunpack.c.l.b16 %v511
        %v712 = vunpack.c.l.b16 %v512
        %v713 = vunpack.c.l.b16 %v513
        %v714 = vunpack.c.l.b16 %v514
        %v715 = vunpack.c.l.b16 %v515
        %v716 = vunpack.c.l.b16 %v516
        %v717 = vunpack.c.l.b16 %v517
        %v718 = vunpack.c.l.b16 %v518
        %v719 = vunpack.c.l.b16 %v519
        %v720 = vunpack.c.l.b16 %v520
        %v721 = vunpack.c.l.b16 %v521
        %v722 = vunpack.c.l.b16 %v522
        %v723 = vunpack.c.l.b16 %v523
        %v724 = vpack.c.b16 %v627, %v626
        %v725 = vpack.c.b16 %v629, %v628
        %v726 = vpack.c.b16 %v631, %v630
        %v727 = vpack.c.b16 %v633, %v632
        %v728 = vpack.c.b16 %v635, %v634
        %v729 = vpack.c.b16 %v637, %v636
        %v730 = vpack.c.b16 %v639, %v638
        %v731 = vpack.c.b16 %v641, %v640
        %v732 = vpack.c.b16 %v643, %v642
        %v733 = vpack.c.b16 %v645, %v644
        %v734 = vpack.c.b16 %v647, %v646
        %v735 = vpack.c.b16 %v649, %v648
        %v736 = vpack.c.b16 %v651, %v650
        %v737 = vpack.c.b16 %v653, %v652
        %v738 = vpack.c.b16 %v655, %v654
        %v739 = vpack.c.b16 %v657, %v656
        %v740 = vpack.c.b16 %v659, %v658
        %v741 = vpack.c.b16 %v661, %v660
        %v742 = vpack.c.b16 %v663, %v662
        %v743 = vpack.c.b16 %v665, %v664
        %v744 = vpack.c.b16 %v667, %v666
        %v745 = vpack.c.b16 %v669, %v668
        %v746 = vpack.c.b16 %v671, %v670
        %v747 = vpack.c.b16 %v673, %v672
        %v748 = vpack.c.b16 %v675, %v674
        %v749 = vpack.c.b16 %v677, %v676
        %v750 = vpack.c.b16 %v679, %v678
        %v751 = vpack.c.b16 %v681, %v680
        %v752 = vpack.c.b16 %v683, %v682
        %v753 = vpack.c.b16 %v685, %v684
        %v754 = vpack.c.b16 %v687, %v686
        %v755 = vpack.c.b16 %v689, %v688
        %v756 = vpack.c.b16 %v691, %v690
        %v757 = vpack.c.b16 %v693, %v692
        %v758 = vpack.c.b16 %v695, %v694
        %v759 = vpack.c.b16 %v697, %v696
        %v760 = vpack.c.b16 %v699, %v698
        %v761 = vpack.c.b16 %v701, %v700
        %v762 = vpack.c.b16 %v703, %v702
        %v763 = vpack.c.b16 %v705, %v704
        %v764 = vpack.c.b16 %v707, %v706
        %v765 = vpack.c.b16 %v709, %v708
        %v766 = vpack.c.b16 %v711, %v710
        %v767 = vpack.c.b16 %v713, %v712
        %v768 = vpack.c.b16 %v715, %v714
        %v769 = vpack.c.b16 %v717, %v716
        %v770 = vpack.c.b16 %v719, %v718
        %v771 = vpack.c.b16 %v721, %v720
        %v772 = vpack.c.b16 %v723, %v722
        %vm822 = vcmask 130048
        %v824 = vsel %vm822, %v375, 0
        %v827 = vsel %vm822, %v382, 0
        %v830 = vsel %vm822, %v389, 0
        %v833 = vsel %vm822, %v396, 0
        %v836 = vsel %vm822, %v403, 0
        %v839 = vsel %vm822, %v410, 0
        %v842 = vsel %vm822, %v417, 0
        %v845 = vsel %vm822, %v424, 0
        %847 = vmatprep.subr.bf16.mxu0 0
        %848 = vmatpush1.bf16.msra.mxu0 %v731
        %849 = vmatprep.subr.bf16.mxu0 0
        %850 = vmatpush1.bf16.msra.mxu0 %v730
        %851 = vmatprep.subr.bf16.mxu0 0
        %852 = vmatpush1.bf16.msra.mxu0 %v729
        %853 = vmatprep.subr.bf16.mxu0 0
        %854 = vmatpush1.bf16.msra.mxu0 %v728
        %855 = vmatprep.subr.bf16.mxu0 0
        %856 = vmatpush1.bf16.msra.mxu0 %v727
        %857 = vmatprep.subr.bf16.mxu0 0
        %858 = vmatpush1.bf16.msra.mxu0 %v726
        %859 = vmatprep.subr.bf16.mxu0 0
        %860 = vmatpush1.bf16.msra.mxu0 %v725
        %861 = vmatprep.subr.bf16.mxu0 0
        %862 = vmatpush1.bf16.msra.mxu0 %v724
        %863 = vmatprep.subr.bf16.mxu0 0
        %864 = vmatpush2.bf16.msra.mxu0 %v739
        %865 = vmatprep.subr.bf16.mxu0 0
        %866 = vmatpush2.bf16.msra.mxu0 %v738
        %867 = vmatprep.subr.bf16.mxu0 0
        %868 = vmatpush2.bf16.msra.mxu0 %v737
        %869 = vmatprep.subr.bf16.mxu0 0
        %870 = vmatpush2.bf16.msra.mxu0 %v736
        %871 = vmatprep.subr.bf16.mxu0 0
        %872 = vmatpush2.bf16.msra.mxu0 %v735
        %873 = vmatprep.subr.bf16.mxu0 0
        %874 = vmatpush2.bf16.msra.mxu0 %v734
        %875 = vmatprep.subr.bf16.mxu0 0
        %876 = vmatpush2.bf16.msra.mxu0 %v733
        %877 = vmatprep.subr.bf16.mxu0 0
        %878 = vmatpush2.bf16.msra.mxu0 %v732
        %879 = vmatprep.mubr.bf16.mxu0 %v370
        %880 = vmatmul.mubr.bf16.gmra.mxu0 %v369
        %v881 = vpop.f32.mrf.mxu0
        %v882 = vadd.f32 %v527, %v881
        %v883 = vpop.f32.mrf.mxu0
        %v884 = vpop.f32.mrf.mxu0
        %v885 = vadd.f32 %v527, %v884
        %v886 = vpop.f32.mrf.mxu0
        %887 = vmatprep.mubr.bf16.mxu0 %v377
        %888 = vmatmul.mubr.bf16.gmra.mxu0 %v376
        %v889 = vpop.f32.mrf.mxu0
        %v890 = vadd.f32 %v527, %v889
        %v891 = vpop.f32.mrf.mxu0
        %v892 = vpop.f32.mrf.mxu0
        %v893 = vadd.f32 %v527, %v892
        %v894 = vpop.f32.mrf.mxu0
        %895 = vmatprep.mubr.bf16.mxu0 %v384
        %896 = vmatmul.mubr.bf16.gmra.mxu0 %v383
        %v897 = vpop.f32.mrf.mxu0
        %v898 = vadd.f32 %v527, %v897
        %v899 = vpop.f32.mrf.mxu0
        %v900 = vpop.f32.mrf.mxu0
        %v901 = vadd.f32 %v527, %v900
        %v902 = vpop.f32.mrf.mxu0
        %903 = vmatprep.mubr.bf16.mxu0 %v391
        %904 = vmatmul.mubr.bf16.gmra.mxu0 %v390
        %v905 = vpop.f32.mrf.mxu0
        %v906 = vadd.f32 %v527, %v905
        %v907 = vpop.f32.mrf.mxu0
        %v908 = vpop.f32.mrf.mxu0
        %v909 = vadd.f32 %v527, %v908
        %v910 = vpop.f32.mrf.mxu0
        %911 = vmatprep.mubr.bf16.mxu0 %v398
        %912 = vmatmul.mubr.bf16.gmra.mxu0 %v397
        %v913 = vpop.f32.mrf.mxu0
        %v914 = vadd.f32 %v527, %v913
        %v915 = vpop.f32.mrf.mxu0
        %v916 = vpop.f32.mrf.mxu0
        %v917 = vadd.f32 %v527, %v916
        %v918 = vpop.f32.mrf.mxu0
        %919 = vmatprep.mubr.bf16.mxu0 %v405
        %920 = vmatmul.mubr.bf16.gmra.mxu0 %v404
        %v921 = vpop.f32.mrf.mxu0
        %v922 = vadd.f32 %v527, %v921
        %v923 = vpop.f32.mrf.mxu0
        %v924 = vpop.f32.mrf.mxu0
        %v925 = vadd.f32 %v527, %v924
        %v926 = vpop.f32.mrf.mxu0
        %927 = vmatprep.mubr.bf16.mxu0 %v412
        %928 = vmatmul.mubr.bf16.gmra.mxu0 %v411
        %v929 = vpop.f32.mrf.mxu0
        %v930 = vadd.f32 %v527, %v929
        %v931 = vpop.f32.mrf.mxu0
        %v932 = vpop.f32.mrf.mxu0
        %v933 = vadd.f32 %v527, %v932
        %v934 = vpop.f32.mrf.mxu0
        %935 = vmatprep.mubr.bf16.mxu0 %v419
        %936 = vmatmul.mubr.bf16.gmra.mxu0 %v418
        %v937 = vpop.f32.mrf.mxu0
        %v938 = vadd.f32 %v527, %v937
        %v939 = vpop.f32.mrf.mxu0
        %v940 = vpop.f32.mrf.mxu0
        %v941 = vadd.f32 %v527, %v940
        %v942 = vpop.f32.mrf.mxu0
        %943 = vdwg.mxu0
        %944 = vmatprep.subr.bf16.mxu0 0
        %945 = vmatpush1.bf16.msra.mxu0 %v747
        %946 = vmatprep.subr.bf16.mxu0 0
        %947 = vmatpush1.bf16.msra.mxu0 %v746
        %948 = vmatprep.subr.bf16.mxu0 0
        %949 = vmatpush1.bf16.msra.mxu0 %v745
        %950 = vmatprep.subr.bf16.mxu0 0
        %951 = vmatpush1.bf16.msra.mxu0 %v744
        %952 = vmatprep.subr.bf16.mxu0 0
        %953 = vmatpush1.bf16.msra.mxu0 %v743
        %954 = vmatprep.subr.bf16.mxu0 0
        %955 = vmatpush1.bf16.msra.mxu0 %v742
        %956 = vmatprep.subr.bf16.mxu0 0
        %957 = vmatpush1.bf16.msra.mxu0 %v741
        %958 = vmatprep.subr.bf16.mxu0 0
        %959 = vmatpush1.bf16.msra.mxu0 %v740
        %960 = vmatprep.subr.bf16.mxu0 0
        %961 = vmatpush2.bf16.msra.mxu0 %v755
        %962 = vmatprep.subr.bf16.mxu0 0
        %963 = vmatpush2.bf16.msra.mxu0 %v754
        %964 = vmatprep.subr.bf16.mxu0 0
        %965 = vmatpush2.bf16.msra.mxu0 %v753
        %966 = vmatprep.subr.bf16.mxu0 0
        %967 = vmatpush2.bf16.msra.mxu0 %v752
        %968 = vmatprep.subr.bf16.mxu0 0
        %969 = vmatpush2.bf16.msra.mxu0 %v751
        %970 = vmatprep.subr.bf16.mxu0 0
        %971 = vmatpush2.bf16.msra.mxu0 %v750
        %972 = vmatprep.subr.bf16.mxu0 0
        %973 = vmatpush2.bf16.msra.mxu0 %v749
        %974 = vmatprep.subr.bf16.mxu0 0
        %975 = vmatpush2.bf16.msra.mxu0 %v748
        %976 = vmatprep.mubr.bf16.mxu0 %v372
        %977 = vmatmul.mubr.bf16.gmra.mxu0 %v371
        %v978 = vpop.f32.mrf.mxu0
        %v979 = vadd.f32 %v882, %v978
        %v980 = vpop.f32.mrf.mxu0
        %v981 = vpop.f32.mrf.mxu0
        %v982 = vadd.f32 %v885, %v981
        %v983 = vpop.f32.mrf.mxu0
        %984 = vmatprep.mubr.bf16.mxu0 %v379
        %985 = vmatmul.mubr.bf16.gmra.mxu0 %v378
        %v986 = vpop.f32.mrf.mxu0
        %v987 = vadd.f32 %v890, %v986
        %v988 = vpop.f32.mrf.mxu0
        %v989 = vpop.f32.mrf.mxu0
        %v990 = vadd.f32 %v893, %v989
        %v991 = vpop.f32.mrf.mxu0
        %992 = vmatprep.mubr.bf16.mxu0 %v386
        %993 = vmatmul.mubr.bf16.gmra.mxu0 %v385
        %v994 = vpop.f32.mrf.mxu0
        %v995 = vadd.f32 %v898, %v994
        %v996 = vpop.f32.mrf.mxu0
        %v997 = vpop.f32.mrf.mxu0
        %v998 = vadd.f32 %v901, %v997
        %v999 = vpop.f32.mrf.mxu0
        %1000 = vmatprep.mubr.bf16.mxu0 %v393
        %1001 = vmatmul.mubr.bf16.gmra.mxu0 %v392
        %v1002 = vpop.f32.mrf.mxu0
        %v1003 = vadd.f32 %v906, %v1002
        %v1004 = vpop.f32.mrf.mxu0
        %v1005 = vpop.f32.mrf.mxu0
        %v1006 = vadd.f32 %v909, %v1005
        %v1007 = vpop.f32.mrf.mxu0
        %1008 = vmatprep.mubr.bf16.mxu0 %v400
        %1009 = vmatmul.mubr.bf16.gmra.mxu0 %v399
        %v1010 = vpop.f32.mrf.mxu0
        %v1011 = vadd.f32 %v914, %v1010
        %v1012 = vpop.f32.mrf.mxu0
        %v1013 = vpop.f32.mrf.mxu0
        %v1014 = vadd.f32 %v917, %v1013
        %v1015 = vpop.f32.mrf.mxu0
        %1016 = vmatprep.mubr.bf16.mxu0 %v407
        %1017 = vmatmul.mubr.bf16.gmra.mxu0 %v406
        %v1018 = vpop.f32.mrf.mxu0
        %v1019 = vadd.f32 %v922, %v1018
        %v1020 = vpop.f32.mrf.mxu0
        %v1021 = vpop.f32.mrf.mxu0
        %v1022 = vadd.f32 %v925, %v1021
        %v1023 = vpop.f32.mrf.mxu0
        %1024 = vmatprep.mubr.bf16.mxu0 %v414
        %1025 = vmatmul.mubr.bf16.gmra.mxu0 %v413
        %v1026 = vpop.f32.mrf.mxu0
        %v1027 = vadd.f32 %v930, %v1026
        %v1028 = vpop.f32.mrf.mxu0
        %v1029 = vpop.f32.mrf.mxu0
        %v1030 = vadd.f32 %v933, %v1029
        %v1031 = vpop.f32.mrf.mxu0
        %1032 = vmatprep.mubr.bf16.mxu0 %v421
        %1033 = vmatmul.mubr.bf16.gmra.mxu0 %v420
        %v1034 = vpop.f32.mrf.mxu0
        %v1035 = vadd.f32 %v938, %v1034
        %v1036 = vpop.f32.mrf.mxu0
        %v1037 = vpop.f32.mrf.mxu0
        %v1038 = vadd.f32 %v941, %v1037
        %v1039 = vpop.f32.mrf.mxu0
        %1040 = vdwg.mxu0
        %1041 = vmatprep.subr.bf16.mxu0 0
        %1042 = vmatpush1.bf16.msra.mxu0 %v763
        %1043 = vmatprep.subr.bf16.mxu0 0
        %1044 = vmatpush1.bf16.msra.mxu0 %v762
        %1045 = vmatprep.subr.bf16.mxu0 0
        %1046 = vmatpush1.bf16.msra.mxu0 %v761
        %1047 = vmatprep.subr.bf16.mxu0 0
        %1048 = vmatpush1.bf16.msra.mxu0 %v760
        %1049 = vmatprep.subr.bf16.mxu0 0
        %1050 = vmatpush1.bf16.msra.mxu0 %v759
        %1051 = vmatprep.subr.bf16.mxu0 0
        %1052 = vmatpush1.bf16.msra.mxu0 %v758
        %1053 = vmatprep.subr.bf16.mxu0 0
        %1054 = vmatpush1.bf16.msra.mxu0 %v757
        %1055 = vmatprep.subr.bf16.mxu0 0
        %1056 = vmatpush1.bf16.msra.mxu0 %v756
        %1057 = vmatprep.subr.bf16.mxu0 0
        %1058 = vmatpush2.bf16.msra.mxu0 %v771
        %1059 = vmatprep.subr.bf16.mxu0 0
        %1060 = vmatpush2.bf16.msra.mxu0 %v770
        %1061 = vmatprep.subr.bf16.mxu0 0
        %1062 = vmatpush2.bf16.msra.mxu0 %v769
        %1063 = vmatprep.subr.bf16.mxu0 0
        %1064 = vmatpush2.bf16.msra.mxu0 %v768
        %1065 = vmatprep.subr.bf16.mxu0 0
        %1066 = vmatpush2.bf16.msra.mxu0 %v767
        %1067 = vmatprep.subr.bf16.mxu0 0
        %1068 = vmatpush2.bf16.msra.mxu0 %v766
        %1069 = vmatprep.subr.bf16.mxu0 0
        %1070 = vmatpush2.bf16.msra.mxu0 %v765
        %1071 = vmatprep.subr.bf16.mxu0 0
        %1072 = vmatpush2.bf16.msra.mxu0 %v764
        %1073 = vmatprep.mubr.bf16.mxu0 %v374
        %1074 = vmatmul.mubr.bf16.gmra.mxu0 %v373
        %v1075 = vpop.f32.mrf.mxu0
        %v1076 = vadd.f32 %v979, %v1075
        %v1077 = vpop.f32.mrf.mxu0
        %v1078 = vpop.f32.mrf.mxu0
        %v1079 = vadd.f32 %v982, %v1078
        %v1080 = vpop.f32.mrf.mxu0
        %1081 = vmatprep.mubr.bf16.mxu0 %v381
        %1082 = vmatmul.mubr.bf16.gmra.mxu0 %v380
        %v1083 = vpop.f32.mrf.mxu0
        %v1084 = vadd.f32 %v987, %v1083
        %v1085 = vpop.f32.mrf.mxu0
        %v1086 = vpop.f32.mrf.mxu0
        %v1087 = vadd.f32 %v990, %v1086
        %v1088 = vpop.f32.mrf.mxu0
        %1089 = vmatprep.mubr.bf16.mxu0 %v388
        %1090 = vmatmul.mubr.bf16.gmra.mxu0 %v387
        %v1091 = vpop.f32.mrf.mxu0
        %v1092 = vadd.f32 %v995, %v1091
        %v1093 = vpop.f32.mrf.mxu0
        %v1094 = vpop.f32.mrf.mxu0
        %v1095 = vadd.f32 %v998, %v1094
        %v1096 = vpop.f32.mrf.mxu0
        %1097 = vmatprep.mubr.bf16.mxu0 %v395
        %1098 = vmatmul.mubr.bf16.gmra.mxu0 %v394
        %v1099 = vpop.f32.mrf.mxu0
        %v1100 = vadd.f32 %v1003, %v1099
        %v1101 = vpop.f32.mrf.mxu0
        %v1102 = vpop.f32.mrf.mxu0
        %v1103 = vadd.f32 %v1006, %v1102
        %v1104 = vpop.f32.mrf.mxu0
        %1105 = vmatprep.mubr.bf16.mxu0 %v402
        %1106 = vmatmul.mubr.bf16.gmra.mxu0 %v401
        %v1107 = vpop.f32.mrf.mxu0
        %v1108 = vadd.f32 %v1011, %v1107
        %v1109 = vpop.f32.mrf.mxu0
        %v1110 = vpop.f32.mrf.mxu0
        %v1111 = vadd.f32 %v1014, %v1110
        %v1112 = vpop.f32.mrf.mxu0
        %1113 = vmatprep.mubr.bf16.mxu0 %v409
        %1114 = vmatmul.mubr.bf16.gmra.mxu0 %v408
        %v1115 = vpop.f32.mrf.mxu0
        %v1116 = vadd.f32 %v1019, %v1115
        %v1117 = vpop.f32.mrf.mxu0
        %v1118 = vpop.f32.mrf.mxu0
        %v1119 = vadd.f32 %v1022, %v1118
        %v1120 = vpop.f32.mrf.mxu0
        %1121 = vmatprep.mubr.bf16.mxu0 %v416
        %1122 = vmatmul.mubr.bf16.gmra.mxu0 %v415
        %v1123 = vpop.f32.mrf.mxu0
        %v1124 = vadd.f32 %v1027, %v1123
        %v1125 = vpop.f32.mrf.mxu0
        %v1126 = vpop.f32.mrf.mxu0
        %v1127 = vadd.f32 %v1030, %v1126
        %v1128 = vpop.f32.mrf.mxu0
        %1129 = vmatprep.mubr.bf16.mxu0 %v423
        %1130 = vmatmul.mubr.bf16.gmra.mxu0 %v422
        %v1131 = vpop.f32.mrf.mxu0
        %v1132 = vadd.f32 %v1035, %v1131
        %v1133 = vpop.f32.mrf.mxu0
        %v1134 = vpop.f32.mrf.mxu0
        %v1135 = vadd.f32 %v1038, %v1134
        %v1136 = vpop.f32.mrf.mxu0
        %1137 = vdwg.mxu0
        %1138 = vmatprep.subr.bf16.mxu0 0
        %1139 = vmatpush1.bf16.msra.mxu0 0
        %1140 = vmatprep.subr.bf16.mxu0 0
        %1141 = vmatpush1.bf16.msra.mxu0 0
        %1142 = vmatprep.subr.bf16.mxu0 0
        %1143 = vmatpush1.bf16.msra.mxu0 0
        %1144 = vmatprep.subr.bf16.mxu0 0
        %1145 = vmatpush1.bf16.msra.mxu0 0
        %1146 = vmatprep.subr.bf16.mxu0 0
        %1147 = vmatpush1.bf16.msra.mxu0 0
        %1148 = vmatprep.subr.bf16.mxu0 0
        %1149 = vmatpush1.bf16.msra.mxu0 0
        %1150 = vmatprep.subr.bf16.mxu0 0
        %1151 = vmatpush1.bf16.msra.mxu0 0
        %1152 = vmatprep.subr.bf16.mxu0 0
        %1153 = vmatpush1.bf16.msra.mxu0 %v772
        %1154 = vmatprep.subr.bf16.mxu0 0
        %1155 = vmatpush2.bf16.msra.mxu0 0
        %1156 = vmatprep.subr.bf16.mxu0 0
        %1157 = vmatpush2.bf16.msra.mxu0 0
        %1158 = vmatprep.subr.bf16.mxu0 0
        %1159 = vmatpush2.bf16.msra.mxu0 0
        %1160 = vmatprep.subr.bf16.mxu0 0
        %1161 = vmatpush2.bf16.msra.mxu0 0
        %1162 = vmatprep.subr.bf16.mxu0 0
        %1163 = vmatpush2.bf16.msra.mxu0 0
        %1164 = vmatprep.subr.bf16.mxu0 0
        %1165 = vmatpush2.bf16.msra.mxu0 0
        %1166 = vmatprep.subr.bf16.mxu0 0
        %1167 = vmatpush2.bf16.msra.mxu0 0
        %1168 = vmatprep.subr.bf16.mxu0 0
        %1169 = vmatpush2.bf16.msra.mxu0 0
        %1170 = vmatprep.mubr.bf16.mxu0 0
        %1171 = vmatmul.mubr.bf16.gmra.mxu0 %v824
        %v1172 = vpop.f32.mrf.mxu0
        %v1173 = vadd.f32 %v1076, %v1172
        %v1174 = vpop.f32.mrf.mxu0
        %v1175 = vpop.f32.mrf.mxu0
        %v1176 = vadd.f32 %v1079, %v1175
        %v1177 = vpop.f32.mrf.mxu0
        %1178 = vmatprep.mubr.bf16.mxu0 0
        %1179 = vmatmul.mubr.bf16.gmra.mxu0 %v827
        %v1180 = vpop.f32.mrf.mxu0
        %v1181 = vadd.f32 %v1084, %v1180
        %v1182 = vpop.f32.mrf.mxu0
        %v1183 = vpop.f32.mrf.mxu0
        %v1184 = vadd.f32 %v1087, %v1183
        %v1185 = vpop.f32.mrf.mxu0
        %1186 = vmatprep.mubr.bf16.mxu0 0
        %1187 = vmatmul.mubr.bf16.gmra.mxu0 %v830
        %v1188 = vpop.f32.mrf.mxu0
        %v1189 = vadd.f32 %v1092, %v1188
        %v1190 = vpop.f32.mrf.mxu0
        %v1191 = vpop.f32.mrf.mxu0
        %v1192 = vadd.f32 %v1095, %v1191
        %v1193 = vpop.f32.mrf.mxu0
        %1194 = vmatprep.mubr.bf16.mxu0 0
        %1195 = vmatmul.mubr.bf16.gmra.mxu0 %v833
        %v1196 = vpop.f32.mrf.mxu0
        %v1197 = vadd.f32 %v1100, %v1196
        %v1198 = vpop.f32.mrf.mxu0
        %v1199 = vpop.f32.mrf.mxu0
        %v1200 = vadd.f32 %v1103, %v1199
        %v1201 = vpop.f32.mrf.mxu0
        %1202 = vmatprep.mubr.bf16.mxu0 0
        %1203 = vmatmul.mubr.bf16.gmra.mxu0 %v836
        %v1204 = vpop.f32.mrf.mxu0
        %v1205 = vadd.f32 %v1108, %v1204
        %v1206 = vpop.f32.mrf.mxu0
        %v1207 = vpop.f32.mrf.mxu0
        %v1208 = vadd.f32 %v1111, %v1207
        %v1209 = vpop.f32.mrf.mxu0
        %1210 = vmatprep.mubr.bf16.mxu0 0
        %1211 = vmatmul.mubr.bf16.gmra.mxu0 %v839
        %v1212 = vpop.f32.mrf.mxu0
        %v1213 = vadd.f32 %v1116, %v1212
        %v1214 = vpop.f32.mrf.mxu0
        %v1215 = vpop.f32.mrf.mxu0
        %v1216 = vadd.f32 %v1119, %v1215
        %v1217 = vpop.f32.mrf.mxu0
        %1218 = vmatprep.mubr.bf16.mxu0 0
        %1219 = vmatmul.mubr.bf16.gmra.mxu0 %v842
        %v1220 = vpop.f32.mrf.mxu0
        %v1221 = vadd.f32 %v1124, %v1220
        %v1222 = vpop.f32.mrf.mxu0
        %v1223 = vpop.f32.mrf.mxu0
        %v1224 = vadd.f32 %v1127, %v1223
        %v1225 = vpop.f32.mrf.mxu0
        %1226 = vmatprep.mubr.bf16.mxu0 0
        %1227 = vmatmul.mubr.bf16.gmra.mxu0 %v845
        %v1228 = vpop.f32.mrf.mxu0
        %v1229 = vadd.f32 %v1132, %v1228
        %v1230 = vpop.f32.mrf.mxu0
        %v1231 = vpop.f32.mrf.mxu0
        %v1232 = vadd.f32 %v1135, %v1231
        %v1233 = vpop.f32.mrf.mxu0
        %1234 = vdwg.mxu0
        %v1235 = vpack.c.bf16 %v1176, %v1173
        %v1236 = vpack.c.bf16 %v1184, %v1181
        %v1237 = vpack.c.bf16 %v1192, %v1189
        %v1238 = vpack.c.bf16 %v1200, %v1197
        %v1239 = vpack.c.bf16 %v1208, %v1205
        %v1240 = vpack.c.bf16 %v1216, %v1213
        %v1241 = vpack.c.bf16 %v1224, %v1221
        %v1242 = vpack.c.bf16 %v1232, %v1229
        %v1243 = vld [vmem:[%s2] sm:$0xf]
        %v1244 = vld [vmem:[%s2 + $0x4] sm:$0xf]
        %v1245 = vld [vmem:[%s2 + $0x8] sm:$0xf]
        %v1246 = vld [vmem:[%s2 + $0xc] sm:$0xf]
        %v1247 = vld [vmem:[%s2 + $0x10] sm:$0xf]
        %v1248 = vld [vmem:[%s2 + $0x14] sm:$0xf]
        %v1249 = vld [vmem:[%s2 + $0x18] sm:$0xf]
        %v1250 = vld [vmem:[%s2 + $0x1c] sm:$0xf]
        %v1251 = vld [vmem:[%s2 + $0x20] sm:$0xf]
        %v1252 = vld [vmem:[%s2 + $0x24] sm:$0xf]
        %v1253 = vld [vmem:[%s2 + $0x28] sm:$0xf]
        %v1254 = vld [vmem:[%s2 + $0x2c] sm:$0xf]
        %v1255 = vld [vmem:[%s2 + $0x30] sm:$0xf]
        %v1256 = vld [vmem:[%s2 + $0x34] sm:$0xf]
        %v1257 = vld [vmem:[%s2 + $0x38] sm:$0xf]
        %v1258 = vld [vmem:[%s2 + $0x3c] sm:$0xf]
        %v1259 = vlaneseq
        %v1260 = vshrl.u32 %v1259, 7
        %v1261 = vsub.s32 1, %v1260
        %v1262 = vrot.slane %v425, %v1261
        %v1279 = vunpack.c.l.b16 %v1243
        %v1280 = vunpack.c.l.b16 %v1244
        %v1281 = vunpack.c.l.b16 %v1245
        %v1282 = vunpack.c.l.b16 %v1246
        %v1283 = vunpack.c.l.b16 %v1247
        %v1284 = vunpack.c.l.b16 %v1248
        %v1285 = vunpack.c.l.b16 %v1249
        %v1286 = vunpack.c.l.b16 %v1250
        %v1287 = vunpack.c.l.b16 %v1251
        %v1288 = vunpack.c.l.b16 %v1252
        %v1289 = vunpack.c.l.b16 %v1253
        %v1290 = vunpack.c.l.b16 %v1254
        %v1291 = vunpack.c.l.b16 %v1255
        %v1292 = vunpack.c.l.b16 %v1256
        %v1293 = vunpack.c.l.b16 %v1257
        %v1294 = vunpack.c.l.b16 %v1258
        %v1295 = vpack.c.b16 %v1280, %v1279
        %v1296 = vpack.c.b16 %v1282, %v1281
        %v1297 = vpack.c.b16 %v1284, %v1283
        %v1298 = vpack.c.b16 %v1286, %v1285
        %v1299 = vpack.c.b16 %v1288, %v1287
        %v1300 = vpack.c.b16 %v1290, %v1289
        %v1301 = vpack.c.b16 %v1292, %v1291
        %v1302 = vpack.c.b16 %v1294, %v1293
        %1311 = vmatprep.subr.bf16.mxu0 0
        %1312 = vmatpush1.bf16.msra.mxu0 %v1302
        %1313 = vmatprep.subr.bf16.mxu0 0
        %1314 = vmatpush1.bf16.msra.mxu0 %v1301
        %1315 = vmatprep.subr.bf16.mxu0 0
        %1316 = vmatpush1.bf16.msra.mxu0 %v1300
        %1317 = vmatprep.subr.bf16.mxu0 0
        %1318 = vmatpush1.bf16.msra.mxu0 %v1299
        %1319 = vmatprep.subr.bf16.mxu0 0
        %1320 = vmatpush1.bf16.msra.mxu0 %v1298
        %1321 = vmatprep.subr.bf16.mxu0 0
        %1322 = vmatpush1.bf16.msra.mxu0 %v1297
        %1323 = vmatprep.subr.bf16.mxu0 0
        %1324 = vmatpush1.bf16.msra.mxu0 %v1296
        %1325 = vmatprep.subr.bf16.mxu0 0
        %1326 = vmatpush1.bf16.msra.mxu0 %v1295
        %1327 = vmatprep.subr.bf16.mxu0 0
        %1328 = vmatpush2.bf16.msra.mxu0 0
        %1329 = vmatprep.subr.bf16.mxu0 0
        %1330 = vmatpush2.bf16.msra.mxu0 0
        %1331 = vmatprep.subr.bf16.mxu0 0
        %1332 = vmatpush2.bf16.msra.mxu0 0
        %1333 = vmatprep.subr.bf16.mxu0 0
        %1334 = vmatpush2.bf16.msra.mxu0 0
        %1335 = vmatprep.subr.bf16.mxu0 0
        %1336 = vmatpush2.bf16.msra.mxu0 0
        %1337 = vmatprep.subr.bf16.mxu0 0
        %1338 = vmatpush2.bf16.msra.mxu0 0
        %1339 = vmatprep.subr.bf16.mxu0 0
        %1340 = vmatpush2.bf16.msra.mxu0 0
        %1341 = vmatprep.subr.bf16.mxu0 0
        %1342 = vmatpush2.bf16.msra.mxu0 0
        %1343 = vmatprep.mubr.bf16.mxu0 0
        %1344 = vmatmul.mubr.bf16.gmra.mxu0 %v1235
        %v1345 = vpop.f32.mrf.mxu0
        %v1346 = vadd.f32 %v1262, %v1345
        %v1347 = vpop.f32.mrf.mxu0
        %v1348 = vpop.f32.mrf.mxu0
        %v1349 = vadd.f32 %v1262, %v1348
        %v1350 = vpop.f32.mrf.mxu0
        %1351 = vmatprep.mubr.bf16.mxu0 0
        %1352 = vmatmul.mubr.bf16.gmra.mxu0 %v1236
        %v1353 = vpop.f32.mrf.mxu0
        %v1354 = vadd.f32 %v1262, %v1353
        %v1355 = vpop.f32.mrf.mxu0
        %v1356 = vpop.f32.mrf.mxu0
        %v1357 = vadd.f32 %v1262, %v1356
        %v1358 = vpop.f32.mrf.mxu0
        %1359 = vmatprep.mubr.bf16.mxu0 0
        %1360 = vmatmul.mubr.bf16.gmra.mxu0 %v1237
        %v1361 = vpop.f32.mrf.mxu0
        %v1362 = vadd.f32 %v1262, %v1361
        %v1363 = vpop.f32.mrf.mxu0
        %v1364 = vpop.f32.mrf.mxu0
        %v1365 = vadd.f32 %v1262, %v1364
        %v1366 = vpop.f32.mrf.mxu0
        %1367 = vmatprep.mubr.bf16.mxu0 0
        %1368 = vmatmul.mubr.bf16.gmra.mxu0 %v1238
        %v1369 = vpop.f32.mrf.mxu0
        %v1370 = vadd.f32 %v1262, %v1369
        %v1371 = vpop.f32.mrf.mxu0
        %v1372 = vpop.f32.mrf.mxu0
        %v1373 = vadd.f32 %v1262, %v1372
        %v1374 = vpop.f32.mrf.mxu0
        %1375 = vmatprep.mubr.bf16.mxu0 0
        %1376 = vmatmul.mubr.bf16.gmra.mxu0 %v1239
        %v1377 = vpop.f32.mrf.mxu0
        %v1378 = vadd.f32 %v1262, %v1377
        %v1379 = vpop.f32.mrf.mxu0
        %v1380 = vpop.f32.mrf.mxu0
        %v1381 = vadd.f32 %v1262, %v1380
        %v1382 = vpop.f32.mrf.mxu0
        %1383 = vmatprep.mubr.bf16.mxu0 0
        %1384 = vmatmul.mubr.bf16.gmra.mxu0 %v1240
        %v1385 = vpop.f32.mrf.mxu0
        %v1386 = vadd.f32 %v1262, %v1385
        %v1387 = vpop.f32.mrf.mxu0
        %v1388 = vpop.f32.mrf.mxu0
        %v1389 = vadd.f32 %v1262, %v1388
        %v1390 = vpop.f32.mrf.mxu0
        %1391 = vmatprep.mubr.bf16.mxu0 0
        %1392 = vmatmul.mubr.bf16.gmra.mxu0 %v1241
        %v1393 = vpop.f32.mrf.mxu0
        %v1394 = vadd.f32 %v1262, %v1393
        %v1395 = vpop.f32.mrf.mxu0
        %v1396 = vpop.f32.mrf.mxu0
        %v1397 = vadd.f32 %v1262, %v1396
        %v1398 = vpop.f32.mrf.mxu0
        %1399 = vmatprep.mubr.bf16.mxu0 0
        %1400 = vmatmul.mubr.bf16.gmra.mxu0 %v1242
        %v1401 = vpop.f32.mrf.mxu0
        %v1402 = vadd.f32 %v1262, %v1401
        %v1403 = vpop.f32.mrf.mxu0
        %v1404 = vpop.f32.mrf.mxu0
        %v1405 = vadd.f32 %v1262, %v1404
        %v1406 = vpop.f32.mrf.mxu0
        %1407 = vdwg.mxu0
        %v1408 = vpack.c.bf16 %v1349, %v1346
        %v1409 = vpack.c.bf16 %v1357, %v1354
        %v1410 = vpack.c.bf16 %v1365, %v1362
        %v1411 = vpack.c.bf16 %v1373, %v1370
        %v1412 = vpack.c.bf16 %v1381, %v1378
        %v1413 = vpack.c.bf16 %v1389, %v1386
        %v1414 = vpack.c.bf16 %v1397, %v1394
        %v1415 = vpack.c.bf16 %v1405, %v1402
        %v1416 = vld [vmem:[%s3] sm:$0xf]
        %v1417 = vld [vmem:[%s3 + $0x4] sm:$0xf]
        %v1418 = vld [vmem:[%s3 + $0x8] sm:$0xf]
        %v1419 = vld [vmem:[%s3 + $0xc] sm:$0xf]
        %v1420 = vld [vmem:[%s3 + $0x10] sm:$0xf]
        %v1421 = vld [vmem:[%s3 + $0x14] sm:$0xf]
        %v1422 = vld [vmem:[%s3 + $0x18] sm:$0xf]
        %v1423 = vld [vmem:[%s3 + $0x1c] sm:$0xf]
        %v1424 = vld [vmem:[%s3 + $0x20] sm:$0xf]
        %v1425 = vld [vmem:[%s3 + $0x24] sm:$0xf]
        %v1426 = vld [vmem:[%s3 + $0x28] sm:$0xf]
        %v1427 = vld [vmem:[%s3 + $0x2c] sm:$0xf]
        %v1428 = vld [vmem:[%s3 + $0x30] sm:$0xf]
        %v1429 = vld [vmem:[%s3 + $0x34] sm:$0xf]
        %v1430 = vld [vmem:[%s3 + $0x38] sm:$0xf]
        %v1431 = vld [vmem:[%s3 + $0x3c] sm:$0xf]
        %v1432 = vlaneseq
        %v1433 = vshrl.u32 %v1432, 7
        %v1434 = vsub.s32 2, %v1433
        %v1435 = vrot.slane %v425, %v1434
        %v1452 = vunpack.c.l.b16 %v1416
        %v1453 = vunpack.c.l.b16 %v1417
        %v1454 = vunpack.c.l.b16 %v1418
        %v1455 = vunpack.c.l.b16 %v1419
        %v1456 = vunpack.c.l.b16 %v1420
        %v1457 = vunpack.c.l.b16 %v1421
        %v1458 = vunpack.c.l.b16 %v1422
        %v1459 = vunpack.c.l.b16 %v1423
        %v1460 = vunpack.c.l.b16 %v1424
        %v1461 = vunpack.c.l.b16 %v1425
        %v1462 = vunpack.c.l.b16 %v1426
        %v1463 = vunpack.c.l.b16 %v1427
        %v1464 = vunpack.c.l.b16 %v1428
        %v1465 = vunpack.c.l.b16 %v1429
        %v1466 = vunpack.c.l.b16 %v1430
        %v1467 = vunpack.c.l.b16 %v1431
        %v1468 = vpack.c.b16 %v1453, %v1452
        %v1469 = vpack.c.b16 %v1455, %v1454
        %v1470 = vpack.c.b16 %v1457, %v1456
        %v1471 = vpack.c.b16 %v1459, %v1458
        %v1472 = vpack.c.b16 %v1461, %v1460
        %v1473 = vpack.c.b16 %v1463, %v1462
        %v1474 = vpack.c.b16 %v1465, %v1464
        %v1475 = vpack.c.b16 %v1467, %v1466
        %1484 = vmatprep.subr.bf16.mxu0 0
        %1485 = vmatpush1.bf16.msra.mxu0 %v1475
        %1486 = vmatprep.subr.bf16.mxu0 0
        %1487 = vmatpush1.bf16.msra.mxu0 %v1474
        %1488 = vmatprep.subr.bf16.mxu0 0
        %1489 = vmatpush1.bf16.msra.mxu0 %v1473
        %1490 = vmatprep.subr.bf16.mxu0 0
        %1491 = vmatpush1.bf16.msra.mxu0 %v1472
        %1492 = vmatprep.subr.bf16.mxu0 0
        %1493 = vmatpush1.bf16.msra.mxu0 %v1471
        %1494 = vmatprep.subr.bf16.mxu0 0
        %1495 = vmatpush1.bf16.msra.mxu0 %v1470
        %1496 = vmatprep.subr.bf16.mxu0 0
        %1497 = vmatpush1.bf16.msra.mxu0 %v1469
        %1498 = vmatprep.subr.bf16.mxu0 0
        %1499 = vmatpush1.bf16.msra.mxu0 %v1468
        %1500 = vmatprep.subr.bf16.mxu0 0
        %1501 = vmatpush2.bf16.msra.mxu0 0
        %1502 = vmatprep.subr.bf16.mxu0 0
        %1503 = vmatpush2.bf16.msra.mxu0 0
        %1504 = vmatprep.subr.bf16.mxu0 0
        %1505 = vmatpush2.bf16.msra.mxu0 0
        %1506 = vmatprep.subr.bf16.mxu0 0
        %1507 = vmatpush2.bf16.msra.mxu0 0
        %1508 = vmatprep.subr.bf16.mxu0 0
        %1509 = vmatpush2.bf16.msra.mxu0 0
        %1510 = vmatprep.subr.bf16.mxu0 0
        %1511 = vmatpush2.bf16.msra.mxu0 0
        %1512 = vmatprep.subr.bf16.mxu0 0
        %1513 = vmatpush2.bf16.msra.mxu0 0
        %1514 = vmatprep.subr.bf16.mxu0 0
        %1515 = vmatpush2.bf16.msra.mxu0 0
        %1516 = vmatprep.mubr.bf16.mxu0 0
        %1517 = vmatmul.mubr.bf16.gmra.mxu0 %v1408
        %v1518 = vpop.f32.mrf.mxu0
        %v1519 = vadd.f32 %v1435, %v1518
        %v1520 = vpop.f32.mrf.mxu0
        %v1521 = vpop.f32.mrf.mxu0
        %v1522 = vadd.f32 %v1435, %v1521
        %v1523 = vpop.f32.mrf.mxu0
        %1524 = vmatprep.mubr.bf16.mxu0 0
        %1525 = vmatmul.mubr.bf16.gmra.mxu0 %v1409
        %v1526 = vpop.f32.mrf.mxu0
        %v1527 = vadd.f32 %v1435, %v1526
        %v1528 = vpop.f32.mrf.mxu0
        %v1529 = vpop.f32.mrf.mxu0
        %v1530 = vadd.f32 %v1435, %v1529
        %v1531 = vpop.f32.mrf.mxu0
        %1532 = vmatprep.mubr.bf16.mxu0 0
        %1533 = vmatmul.mubr.bf16.gmra.mxu0 %v1410
        %v1534 = vpop.f32.mrf.mxu0
        %v1535 = vadd.f32 %v1435, %v1534
        %v1536 = vpop.f32.mrf.mxu0
        %v1537 = vpop.f32.mrf.mxu0
        %v1538 = vadd.f32 %v1435, %v1537
        %v1539 = vpop.f32.mrf.mxu0
        %1540 = vmatprep.mubr.bf16.mxu0 0
        %1541 = vmatmul.mubr.bf16.gmra.mxu0 %v1411
        %v1542 = vpop.f32.mrf.mxu0
        %v1543 = vadd.f32 %v1435, %v1542
        %v1544 = vpop.f32.mrf.mxu0
        %v1545 = vpop.f32.mrf.mxu0
        %v1546 = vadd.f32 %v1435, %v1545
        %v1547 = vpop.f32.mrf.mxu0
        %1548 = vmatprep.mubr.bf16.mxu0 0
        %1549 = vmatmul.mubr.bf16.gmra.mxu0 %v1412
        %v1550 = vpop.f32.mrf.mxu0
        %v1551 = vadd.f32 %v1435, %v1550
        %v1552 = vpop.f32.mrf.mxu0
        %v1553 = vpop.f32.mrf.mxu0
        %v1554 = vadd.f32 %v1435, %v1553
        %v1555 = vpop.f32.mrf.mxu0
        %1556 = vmatprep.mubr.bf16.mxu0 0
        %1557 = vmatmul.mubr.bf16.gmra.mxu0 %v1413
        %v1558 = vpop.f32.mrf.mxu0
        %v1559 = vadd.f32 %v1435, %v1558
        %v1560 = vpop.f32.mrf.mxu0
        %v1561 = vpop.f32.mrf.mxu0
        %v1562 = vadd.f32 %v1435, %v1561
        %v1563 = vpop.f32.mrf.mxu0
        %1564 = vmatprep.mubr.bf16.mxu0 0
        %1565 = vmatmul.mubr.bf16.gmra.mxu0 %v1414
        %v1566 = vpop.f32.mrf.mxu0
        %v1567 = vadd.f32 %v1435, %v1566
        %v1568 = vpop.f32.mrf.mxu0
        %v1569 = vpop.f32.mrf.mxu0
        %v1570 = vadd.f32 %v1435, %v1569
        %v1571 = vpop.f32.mrf.mxu0
        %1572 = vmatprep.mubr.bf16.mxu0 0
        %1573 = vmatmul.mubr.bf16.gmra.mxu0 %v1415
        %v1574 = vpop.f32.mrf.mxu0
        %v1575 = vadd.f32 %v1435, %v1574
        %v1576 = vpop.f32.mrf.mxu0
        %v1577 = vpop.f32.mrf.mxu0
        %v1578 = vadd.f32 %v1435, %v1577
        %v1579 = vpop.f32.mrf.mxu0
        %1580 = vdwg.mxu0
        %v1581 = vpack.c.bf16 %v1522, %v1519
        %v1582 = vpack.c.bf16 %v1530, %v1527
        %v1583 = vpack.c.bf16 %v1538, %v1535
        %v1584 = vpack.c.bf16 %v1546, %v1543
        %v1585 = vpack.c.bf16 %v1554, %v1551
        %v1586 = vpack.c.bf16 %v1562, %v1559
        %v1587 = vpack.c.bf16 %v1570, %v1567
        %v1588 = vpack.c.bf16 %v1578, %v1575
        %v1589 = vld [vmem:[%s4] sm:$0xf]
        %v1590 = vld [vmem:[%s4 + $0x4] sm:$0xf]
        %v1591 = vld [vmem:[%s4 + $0x8] sm:$0xf]
        %v1592 = vld [vmem:[%s4 + $0xc] sm:$0xf]
        %v1593 = vld [vmem:[%s4 + $0x10] sm:$0xf]
        %v1594 = vld [vmem:[%s4 + $0x14] sm:$0xf]
        %v1595 = vld [vmem:[%s4 + $0x18] sm:$0xf]
        %v1596 = vld [vmem:[%s4 + $0x1c] sm:$0xf]
        %v1597 = vld [vmem:[%s4 + $0x20] sm:$0xf]
        %v1598 = vld [vmem:[%s4 + $0x24] sm:$0xf]
        %v1599 = vld [vmem:[%s4 + $0x28] sm:$0xf]
        %v1600 = vld [vmem:[%s4 + $0x2c] sm:$0xf]
        %v1601 = vld [vmem:[%s4 + $0x30] sm:$0xf]
        %v1602 = vld [vmem:[%s4 + $0x34] sm:$0xf]
        %v1603 = vld [vmem:[%s4 + $0x38] sm:$0xf]
        %v1604 = vld [vmem:[%s4 + $0x3c] sm:$0xf]
        %v1605 = vlaneseq
        %v1606 = vshrl.u32 %v1605, 7
        %v1607 = vsub.s32 3, %v1606
        %v1608 = vrot.slane %v425, %v1607
        %v1625 = vunpack.c.l.b16 %v1589
        %v1626 = vunpack.c.l.b16 %v1590
        %v1627 = vunpack.c.l.b16 %v1591
        %v1628 = vunpack.c.l.b16 %v1592
        %v1629 = vunpack.c.l.b16 %v1593
        %v1630 = vunpack.c.l.b16 %v1594
        %v1631 = vunpack.c.l.b16 %v1595
        %v1632 = vunpack.c.l.b16 %v1596
        %v1633 = vunpack.c.l.b16 %v1597
        %v1634 = vunpack.c.l.b16 %v1598
        %v1635 = vunpack.c.l.b16 %v1599
        %v1636 = vunpack.c.l.b16 %v1600
        %v1637 = vunpack.c.l.b16 %v1601
        %v1638 = vunpack.c.l.b16 %v1602
        %v1639 = vunpack.c.l.b16 %v1603
        %v1640 = vunpack.c.l.b16 %v1604
        %v1641 = vpack.c.b16 %v1626, %v1625
        %v1642 = vpack.c.b16 %v1628, %v1627
        %v1643 = vpack.c.b16 %v1630, %v1629
        %v1644 = vpack.c.b16 %v1632, %v1631
        %v1645 = vpack.c.b16 %v1634, %v1633
        %v1646 = vpack.c.b16 %v1636, %v1635
        %v1647 = vpack.c.b16 %v1638, %v1637
        %v1648 = vpack.c.b16 %v1640, %v1639
        %1657 = vmatprep.subr.bf16.mxu0 0
        %1658 = vmatpush1.bf16.msra.mxu0 %v1648
        %1659 = vmatprep.subr.bf16.mxu0 0
        %1660 = vmatpush1.bf16.msra.mxu0 %v1647
        %1661 = vmatprep.subr.bf16.mxu0 0
        %1662 = vmatpush1.bf16.msra.mxu0 %v1646
        %1663 = vmatprep.subr.bf16.mxu0 0
        %1664 = vmatpush1.bf16.msra.mxu0 %v1645
        %1665 = vmatprep.subr.bf16.mxu0 0
        %1666 = vmatpush1.bf16.msra.mxu0 %v1644
        %1667 = vmatprep.subr.bf16.mxu0 0
        %1668 = vmatpush1.bf16.msra.mxu0 %v1643
        %1669 = vmatprep.subr.bf16.mxu0 0
        %1670 = vmatpush1.bf16.msra.mxu0 %v1642
        %1671 = vmatprep.subr.bf16.mxu0 0
        %1672 = vmatpush1.bf16.msra.mxu0 %v1641
        %1673 = vmatprep.subr.bf16.mxu0 0
        %1674 = vmatpush2.bf16.msra.mxu0 0
        %1675 = vmatprep.subr.bf16.mxu0 0
        %1676 = vmatpush2.bf16.msra.mxu0 0
        %1677 = vmatprep.subr.bf16.mxu0 0
        %1678 = vmatpush2.bf16.msra.mxu0 0
        %1679 = vmatprep.subr.bf16.mxu0 0
        %1680 = vmatpush2.bf16.msra.mxu0 0
        %1681 = vmatprep.subr.bf16.mxu0 0
        %1682 = vmatpush2.bf16.msra.mxu0 0
        %1683 = vmatprep.subr.bf16.mxu0 0
        %1684 = vmatpush2.bf16.msra.mxu0 0
        %1685 = vmatprep.subr.bf16.mxu0 0
        %1686 = vmatpush2.bf16.msra.mxu0 0
        %1687 = vmatprep.subr.bf16.mxu0 0
        %1688 = vmatpush2.bf16.msra.mxu0 0
        %1689 = vmatprep.mubr.bf16.mxu0 0
        %1690 = vmatmul.mubr.bf16.gmra.mxu0 %v1581
        %v1691 = vpop.f32.mrf.mxu0
        %v1692 = vadd.f32 %v1608, %v1691
        %v1693 = vpop.f32.mrf.mxu0
        %v1694 = vpop.f32.mrf.mxu0
        %v1695 = vadd.f32 %v1608, %v1694
        %v1696 = vpop.f32.mrf.mxu0
        %1697 = vmatprep.mubr.bf16.mxu0 0
        %1698 = vmatmul.mubr.bf16.gmra.mxu0 %v1582
        %v1699 = vpop.f32.mrf.mxu0
        %v1700 = vadd.f32 %v1608, %v1699
        %v1701 = vpop.f32.mrf.mxu0
        %v1702 = vpop.f32.mrf.mxu0
        %v1703 = vadd.f32 %v1608, %v1702
        %v1704 = vpop.f32.mrf.mxu0
        %1705 = vmatprep.mubr.bf16.mxu0 0
        %1706 = vmatmul.mubr.bf16.gmra.mxu0 %v1583
        %v1707 = vpop.f32.mrf.mxu0
        %v1708 = vadd.f32 %v1608, %v1707
        %v1709 = vpop.f32.mrf.mxu0
        %v1710 = vpop.f32.mrf.mxu0
        %v1711 = vadd.f32 %v1608, %v1710
        %v1712 = vpop.f32.mrf.mxu0
        %1713 = vmatprep.mubr.bf16.mxu0 0
        %1714 = vmatmul.mubr.bf16.gmra.mxu0 %v1584
        %v1715 = vpop.f32.mrf.mxu0
        %v1716 = vadd.f32 %v1608, %v1715
        %v1717 = vpop.f32.mrf.mxu0
        %v1718 = vpop.f32.mrf.mxu0
        %v1719 = vadd.f32 %v1608, %v1718
        %v1720 = vpop.f32.mrf.mxu0
        %1721 = vmatprep.mubr.bf16.mxu0 0
        %1722 = vmatmul.mubr.bf16.gmra.mxu0 %v1585
        %v1723 = vpop.f32.mrf.mxu0
        %v1724 = vadd.f32 %v1608, %v1723
        %v1725 = vpop.f32.mrf.mxu0
        %v1726 = vpop.f32.mrf.mxu0
        %v1727 = vadd.f32 %v1608, %v1726
        %v1728 = vpop.f32.mrf.mxu0
        %1729 = vmatprep.mubr.bf16.mxu0 0
        %1730 = vmatmul.mubr.bf16.gmra.mxu0 %v1586
        %v1731 = vpop.f32.mrf.mxu0
        %v1732 = vadd.f32 %v1608, %v1731
        %v1733 = vpop.f32.mrf.mxu0
        %v1734 = vpop.f32.mrf.mxu0
        %v1735 = vadd.f32 %v1608, %v1734
        %v1736 = vpop.f32.mrf.mxu0
        %1737 = vmatprep.mubr.bf16.mxu0 0
        %1738 = vmatmul.mubr.bf16.gmra.mxu0 %v1587
        %v1739 = vpop.f32.mrf.mxu0
        %v1740 = vadd.f32 %v1608, %v1739
        %v1741 = vpop.f32.mrf.mxu0
        %v1742 = vpop.f32.mrf.mxu0
        %v1743 = vadd.f32 %v1608, %v1742
        %v1744 = vpop.f32.mrf.mxu0
        %1745 = vmatprep.mubr.bf16.mxu0 0
        %1746 = vmatmul.mubr.bf16.gmra.mxu0 %v1588
        %v1747 = vpop.f32.mrf.mxu0
        %v1748 = vadd.f32 %v1608, %v1747
        %v1749 = vpop.f32.mrf.mxu0
        %v1750 = vpop.f32.mrf.mxu0
        %v1751 = vadd.f32 %v1608, %v1750
        %v1752 = vpop.f32.mrf.mxu0
        %1753 = vdwg.mxu0
        %1754 = vst [vmem:[%s247] sm:$0xff] %v1692
        %1755 = vst [vmem:[%s247 + $0x8] sm:$0xff] %v1695
        %1756 = vst [vmem:[%s247 + $0x10] sm:$0xff] %v1700
        %1757 = vst [vmem:[%s247 + $0x18] sm:$0xff] %v1703
        %1758 = vst [vmem:[%s247 + $0x20] sm:$0xff] %v1708
        %1759 = vst [vmem:[%s247 + $0x28] sm:$0xff] %v1711
        %1760 = vst [vmem:[%s247 + $0x30] sm:$0xff] %v1716
        %1761 = vst [vmem:[%s247 + $0x38] sm:$0xff] %v1719
        %1762 = vst [vmem:[%s247 + $0x40] sm:$0xff] %v1724
        %1763 = vst [vmem:[%s247 + $0x48] sm:$0xff] %v1727
        %1764 = vst [vmem:[%s247 + $0x50] sm:$0xff] %v1732
        %1765 = vst [vmem:[%s247 + $0x58] sm:$0xff] %v1735
        %1766 = vst [vmem:[%s247 + $0x60] sm:$0xff] %v1740
        %1767 = vst [vmem:[%s247 + $0x68] sm:$0xff] %v1743
        %1768 = vst [vmem:[%s247 + $0x70] sm:$0xff] %v1748
        %1769 = vst [vmem:[%s247 + $0x78] sm:$0xff] %v1751
        %s1770 = sand.u32 %s159, 1
        %s1771 = scalar_lea.sflag [#allocation3], %s1770
        %s1772 = sand.u32 %s159, 1
        %s1773 = smul.addr %s1772, 128
        %s1774 = scalar_lea.vmem [#allocation2], %s1773
        // Predicated region
        $region45: #{tpu_custom_call.1} parent=43 // pred_check
          %p1775 = pneg %p169
        $region46: #{tpu_custom_call.1} parent=43 // pred_check_branch
          %1777 = sbr.rel (%p1775) target = $region48
        $region47: #{tpu_custom_call.1} parent=43 // pred_region
          %s1778 = smul.u32 16, %s20
          %s1780 = ssub.s32 2048, 2048
          %1781 = vsyncadd %s1771, %s1780
          %s1782 = smul.addr %s1778, 128
          %s1783 = scalar_lea.hbm %s6, %s1782
          %s1784 = sshll.u32 %s1774, 4
          %s1785 = int_to_ptr.vmem [resolvable:$true] %s1784
          %1790 = dma.vmem_to_hbm [thread:$0]  %s1785, 2048, %s1783, %s1771, 128, 128, 8
        $region48: #{tpu_custom_call.1} parent=43 // pred_fallthru
          _
      $region44: #{tpu_custom_call.1} parent=5 // pred_fallthru
        _
      %p1791 = scmp.le.s32.totalorder 2, %s15
      // Predicated region
      $region49: #{tpu_custom_call.1} parent=5 // pred_check
        %p1792 = pneg %p1791
      $region50: #{tpu_custom_call.1} parent=5 // pred_check_branch
        %1794 = sbr.rel (%p1792) target = $region52
      $region51: #{tpu_custom_call.1} parent=5 // pred_region
        %s1795 = ssub.s32 %s15, 2
        // Predicated region
        $region53: #{tpu_custom_call.1} parent=51 // pred_check
          %p1796 = pneg %p175
        $region54: #{tpu_custom_call.1} parent=51 // pred_check_branch
          %1798 = sbr.rel (%p1796) target = $region56
        $region55: #{tpu_custom_call.1} parent=51 // pred_region
          %s1799 = sand.u32 %s160, 1
          %s1800 = scalar_lea.sflag [#allocation3], %s1799
          %s1801 = sand.u32 %s160, 1
          %s1802 = smul.addr %s1801, 128
          %s1803 = scalar_lea.vmem [#allocation2], %s1802
          %1804 = dma.done %s1800, 2048
        $region56: #{tpu_custom_call.1} parent=51 // pred_fallthru
          _
      $region52: #{tpu_custom_call.1} parent=5 // pred_fallthru
        _
    $region6: #{tpu_custom_call.1} parent=1 // loop_footer
      %s19 = sadd.s32 1, %s15
    $region7: #{tpu_custom_call.1} parent=1 // loop_footer_branch
      %14 = sbr.rel target = $region3
    $region8: #{tpu_custom_call.1} parent=1 // loop_exit
      _
    %1805 = vsyncpa [#allocation3], 1
    %s1806 = scalar_lea.sflag [#allocation3], 1
    %1807 = vsyncpa %s1806, 1

</llo_original>
